<compile_context>
chip_gen: v7x
topology: tpu7x:2x2x1
jax: 0.10.0
libtpu: 0.0.40
codegen_flags: <defaults>
</compile_context>

<pallas_src>
import functools

import jax
import jax.numpy as jnp
from jax import lax
from jax.experimental import pallas as pl
from jax.experimental.pallas import tpu as pltpu

# ---- demo constants (mirrors the PyTorch script) ----------------------------
sentence = ('GitHub Actions makes it easy to automate all your software workflows '
            'from continuous integration and delivery to issue triage and more')
words = sentence.split()
word2idx = {word: idx for idx, word in enumerate(sorted(set(words)))}
n_class = len(word2idx)   # 19
n_hidden = 5

G = 32                                   # lanes per gate block: [ i | f | o | g ] in 128 lanes
CPAD = ((n_class + 7) // 8) * 8          # 24: input feature dim padded to sublane multiple
# packed gate-block order: block0=i, block1=f, block2=o, block3=g
# (source PyTorch column order is i, f, g, o)
_PACK_BLOCK_SRC = (0, 1, 3, 2)

# row offsets of the sections inside the coalesced bf16 weight slab (all 8-aligned)
R_IH_F = 0                    # (CPAD, 128)  forward  input->gates
R_IH_B = R_IH_F + CPAD        # (CPAD, 128)  backward input->gates
R_HH   = R_IH_B + CPAD        # (G, 128)     forward  hidden->gates
R_FC_F = R_HH + G             # (G, 128)     fc rows for forward hidden
R_FC_B = R_FC_F + G           # (G, 128)     fc rows for backward hidden
W_ROWS = R_FC_B + G           # 144 rows total


# ---- Pallas kernel -----------------------------------------------------------
def bilstm_kernel(x_ref,      # (T*B, CPAD) bf16, time-major, flattened
                  w_ref,      # (W_ROWS, 128) bf16 coalesced weight slab
                  b_ref,      # (3, 128) f32: row0=b_f, row1=b_b, row2=b_fc (padded lanes 0)
                  out_ref,    # (B, 128) f32, lane-dense (cols >= n_class stay 0)
                  *, T, B):
    # ---- static views into the coalesced slabs ------------------------------
    w_ih_f = w_ref[R_IH_F:R_IH_F + CPAD, :]
    w_ih_b = w_ref[R_IH_B:R_IH_B + CPAD, :]
    w_hh   = w_ref[R_HH:R_HH + G, :]
    wfc_f  = w_ref[R_FC_F:R_FC_F + G, :]
    wfc_b  = w_ref[R_FC_B:R_FC_B + G, :]
    b_f  = b_ref[0:1, :]
    b_b  = b_ref[1:2, :]
    b_fc = b_ref[2:3, :]

    # ---- hoisted input projections: one MXU pass, bias folded in ------------
    x2d = x_ref[...]                                                    # (T*B, CPAD) bf16
    gates_x = (jnp.dot(x2d, w_ih_f, preferred_element_type=jnp.float32)
               + b_f)                                                   # (T*B, 128) f32
    gates_bwd = (jnp.dot(x2d[(T - 1) * B:T * B, :], w_ih_b,
                         preferred_element_type=jnp.float32)
                 + b_b)                                                 # (B, 128) f32

    def cell(gates, c):
        # gate layout: [ i | f | o | g ], each a 32-lane sub-block of one 128-lane vreg.
        # Two EUP pushes over the gates per step: sigmoid over [i|f|o], tanh over g.
        s = jax.nn.sigmoid(gates[:, 0:3 * G])                           # (B, 96)
        g = jnp.tanh(gates[:, 3 * G:4 * G])                             # (B, 32)
        i = s[:, 0:G]
        f = s[:, G:2 * G]
        o = s[:, 2 * G:3 * G]
        # padded lanes (>= n_hidden in each block): gates == 0 -> i,f,o == 0.5,
        # g == 0, so c and h stay exactly 0 there.
        c_new = f * c + i * g
        h_new = o * jnp.tanh(c_new)
        return h_new, c_new

    h = jnp.zeros((B, G), jnp.float32)
    c = jnp.zeros((B, G), jnp.float32)

    # ---- forward recurrence: fully unrolled, static sublane-aligned slices --
    for t in range(T):
        gates = gates_x[t * B:(t + 1) * B, :] + jnp.dot(
            h.astype(jnp.bfloat16), w_hh, preferred_element_type=jnp.float32)
        h, c = cell(gates, c)

    # ---- reverse direction at output index T-1 -------------------------------
    # First step of the reverse scan: initial state is zero, so h0 @ W_hh_b == 0.
    h_b, _ = cell(gates_bwd, jnp.zeros((B, G), jnp.float32))

    # ---- fc head: padded rows of wfc / padded lanes of h are exactly 0 -------
    out_ref[...] = (
        jnp.dot(h.astype(jnp.bfloat16), wfc_f, preferred_element_type=jnp.float32)
        + jnp.dot(h_b.astype(jnp.bfloat16), wfc_b, preferred_element_type=jnp.float32)
        + b_fc)


# ---- weight packing into the coalesced, lane-packed slabs ---------------------
def _gate_pack(w):
    """(in_dim, 4H) PyTorch [i,f,g,o] columns -> (in_dim, 4G) packed blocks [i,f,o,g]."""
    H = n_hidden
    in_dim = w.shape[0]
    out = jnp.zeros((in_dim, 4 * G), jnp.float32)
    for blk, src in enumerate(_PACK_BLOCK_SRC):
        out = out.at[:, blk * G:blk * G + H].set(w[:, src * H:(src + 1) * H])
    return out


def _pad_rows(w, rows):
    return jnp.zeros((rows, w.shape[1]), w.dtype).at[:w.shape[0], :].set(w)


def _pack_params(params):
    H = n_hidden
    wih_f = _pad_rows(_gate_pack(params['w_ih_f']), CPAD)            # (24, 128)
    wih_b = _pad_rows(_gate_pack(params['w_ih_b']), CPAD)            # (24, 128)
    whh   = _pad_rows(_gate_pack(params['w_hh_f']), G)               # (32, 128)

    wfc = params['w_fc']                                             # (2H, n_class)
    wfc_f = jnp.zeros((G, 128), jnp.float32).at[:H, :n_class].set(wfc[:H, :])
    wfc_b = jnp.zeros((G, 128), jnp.float32).at[:H, :n_class].set(wfc[H:2 * H, :])

    w_slab = jnp.concatenate([wih_f, wih_b, whh, wfc_f, wfc_b],
                             axis=0).astype(jnp.bfloat16)            # (144, 128) bf16

    b_slab = jnp.zeros((3, 128), jnp.float32)
    b_slab = b_slab.at[0:1, :].set(_gate_pack(params['b_f']))
    b_slab = b_slab.at[1:2, :].set(_gate_pack(params['b_b']))
    b_slab = b_slab.at[2, :n_class].set(params['b_fc'][0])
    return w_slab, b_slab


def bilstm_forward(x, params):
    """x: (B, T, n_class) float32  ->  (B, n_class) float32"""
    B, T, C = x.shape
    xt = jnp.transpose(x, (1, 0, 2)).astype(jnp.float32).reshape(T * B, C)  # row = t*B + b
    x2d = jnp.zeros((T * B, CPAD), jnp.float32).at[:, :C].set(xt).astype(jnp.bfloat16)
    w_slab, b_slab = _pack_params(params)

    vmem = pl.BlockSpec(memory_space=pltpu.MemorySpace.VMEM)
    out = pl.pallas_call(
        functools.partial(bilstm_kernel, T=T, B=B),
        out_shape=jax.ShapeDtypeStruct((B, 128), jnp.float32),   # lane-dense output
        in_specs=[vmem, vmem, vmem],
        out_specs=vmem,
    )(x2d, w_slab, b_slab)
    return out[:, :n_class]


# ---- pure-JAX reference (full bidirectional recurrence, like PyTorch) --------
def bilstm_reference(x, params):
    xt = jnp.transpose(x, (1, 0, 2)).astype(jnp.float32)          # (T, B, C)
    B = x.shape[0]
    H = n_hidden

    def cell(x_t, h, c, wih, whh, b):
        gates = x_t @ wih + h @ whh + b
        i = jax.nn.sigmoid(gates[:, 0 * H:1 * H])
        f = jax.nn.sigmoid(gates[:, 1 * H:2 * H])
        g = jnp.tanh(gates[:, 2 * H:3 * H])
        o = jax.nn.sigmoid(gates[:, 3 * H:4 * H])
        c_new = f * c + i * g
        return o * jnp.tanh(c_new), c_new

    h0 = jnp.zeros((B, H), jnp.float32)
    c0 = jnp.zeros((B, H), jnp.float32)

    def fwd_scan(carry, x_t):
        h, c = carry
        h, c = cell(x_t, h, c, params['w_ih_f'], params['w_hh_f'], params['b_f'])
        return (h, c), h

    _, hs_f = lax.scan(fwd_scan, (h0, c0), xt)                    # (T, B, H)

    def bwd_scan(carry, x_t):
        h, c = carry
        h, c = cell(x_t, h, c, params['w_ih_b'], params['w_hh_b'], params['b_b'])
        return (h, c), h

    _, hs_b = lax.scan(bwd_scan, (h0, c0), xt[::-1])              # processed T-1 .. 0
    hs_b = hs_b[::-1]                                             # back to time order

    out_last = jnp.concatenate([hs_f[-1], hs_b[-1]], axis=-1)     # PyTorch outputs[-1]
    return out_last @ params['w_fc'] + params['b_fc']


# ---- deterministic parameter / input construction ----------------------------
def make_params(key):
    k = 1.0 / jnp.sqrt(jnp.float32(n_hidden))
    keys = jax.random.split(key, 11)

    def u(kk, shape):
        return jax.random.uniform(kk, shape, jnp.float32, -k, k)

    # stored pre-transposed (in_dim, 4H), PyTorch i,f,g,o gate-column order
    return {
        'w_ih_f': u(keys[0], (n_class, 4 * n_hidden)),
        'w_hh_f': u(keys[1], (n_hidden, 4 * n_hidden)),
        'b_f':    u(keys[2], (1, 4 * n_hidden)) + u(keys[3], (1, 4 * n_hidden)),
        'w_ih_b': u(keys[4], (n_class, 4 * n_hidden)),
        'w_hh_b': u(keys[5], (n_hidden, 4 * n_hidden)),   # unused by the kernel (outputs[-1] readout)
        'b_b':    u(keys[6], (1, 4 * n_hidden)) + u(keys[7], (1, 4 * n_hidden)),
        'w_fc':   u(keys[8], (2 * n_hidden, n_class)),
        'b_fc':   u(keys[9], (1, n_class)),
    }


if __name__ == "__main__":
    key = jax.random.PRNGKey(0)
    pkey, ikey = jax.random.split(key)

    params = make_params(pkey)

    batch = 16
    seq_len = 8
    # one-hot word-index inputs, as in the demo
    idx = jax.random.randint(ikey, (batch, seq_len), 0, n_class)
    x = jax.nn.one_hot(idx, n_class, dtype=jnp.float32)           # (B, T, n_class)

    out = bilstm_forward(x, params)
    out = jax.block_until_ready(out)

    ref = bilstm_reference(x, params)
    assert out.shape == (batch, n_class)
    # bf16 MXU operands (f32 accumulation) -> loosened tolerance vs the f32 reference
    assert jnp.allclose(out, ref, atol=5e-2, rtol=5e-2), "mismatch vs reference"

    print("KERNEL_OK")
</pallas_src>

<mosaic_0001>
module attributes {stable_mosaic.version = 11 : i64} {
  func.func @bilstm_kernel(%arg0: memref<128x24xbf16, #tpu.memory_space<vmem>>, %arg1: memref<144x128xbf16, #tpu.memory_space<vmem>>, %arg2: memref<3x128xf32, #tpu.memory_space<vmem>>, %arg3: memref<16x128xf32, #tpu.memory_space<vmem>>) attributes {dimension_semantics = [], scalar_prefetch = 0 : i64, scratch_operands = 0 : i64, tpu.core_type = #tpu.core_type<tc>} {
    %c0 = arith.constant 0 : index
    %c0_0 = arith.constant 0 : index
    %0 = vector.load %arg1[%c0, %c0_0] : memref<144x128xbf16, #tpu.memory_space<vmem>>, vector<24x128xbf16>
    %c24 = arith.constant 24 : index
    %c0_1 = arith.constant 0 : index
    %1 = vector.load %arg1[%c24, %c0_1] : memref<144x128xbf16, #tpu.memory_space<vmem>>, vector<24x128xbf16>
    %c48 = arith.constant 48 : index
    %c0_2 = arith.constant 0 : index
    %2 = vector.load %arg1[%c48, %c0_2] : memref<144x128xbf16, #tpu.memory_space<vmem>>, vector<32x128xbf16>
    %c80 = arith.constant 80 : index
    %c0_3 = arith.constant 0 : index
    %3 = vector.load %arg1[%c80, %c0_3] : memref<144x128xbf16, #tpu.memory_space<vmem>>, vector<32x128xbf16>
    %c112 = arith.constant 112 : index
    %c0_4 = arith.constant 0 : index
    %4 = vector.load %arg1[%c112, %c0_4] : memref<144x128xbf16, #tpu.memory_space<vmem>>, vector<32x128xbf16>
    %c0_5 = arith.constant 0 : index
    %c0_6 = arith.constant 0 : index
    %5 = vector.load %arg2[%c0_5, %c0_6] : memref<3x128xf32, #tpu.memory_space<vmem>>, vector<1x128xf32>
    %c1 = arith.constant 1 : index
    %c0_7 = arith.constant 0 : index
    %6 = vector.load %arg2[%c1, %c0_7] : memref<3x128xf32, #tpu.memory_space<vmem>>, vector<1x128xf32>
    %c2 = arith.constant 2 : index
    %c0_8 = arith.constant 0 : index
    %7 = vector.load %arg2[%c2, %c0_8] : memref<3x128xf32, #tpu.memory_space<vmem>>, vector<1x128xf32>
    %c0_9 = arith.constant 0 : index
    %c0_10 = arith.constant 0 : index
    %8 = vector.load %arg0[%c0_9, %c0_10] : memref<128x24xbf16, #tpu.memory_space<vmem>>, vector<128x24xbf16>
    %cst = arith.constant dense<0.000000e+00> : vector<128x128xf32>
    %9 = tpu.matmul %8, %0, %cst {dimension_numbers = #tpu.dot_dimension_numbers<[1], [0], [0], [1], [0, 0, 1, 1], [], []>} : vector<128x24xbf16>, vector<24x128xbf16>, vector<128x128xf32> -> vector<128x128xf32>
    %10 = vector.broadcast %5 : vector<1x128xf32> to vector<128x128xf32>
    %11 = arith.addf %9, %10 : vector<128x128xf32>
    %12 = vector.extract_strided_slice %8 {offsets = [112, 0], sizes = [16, 24], strides = [1, 1]} : vector<128x24xbf16> to vector<16x24xbf16>
    %cst_11 = arith.constant dense<0.000000e+00> : vector<16x128xf32>
    %13 = tpu.matmul %12, %1, %cst_11 {dimension_numbers = #tpu.dot_dimension_numbers<[1], [0], [0], [1], [0, 0, 1, 1], [], []>} : vector<16x24xbf16>, vector<24x128xbf16>, vector<16x128xf32> -> vector<16x128xf32>
    %14 = vector.broadcast %6 : vector<1x128xf32> to vector<16x128xf32>
    %15 = arith.addf %13, %14 : vector<16x128xf32>
    %cst_12 = arith.constant 0.000000e+00 : f32
    %16 = vector.broadcast %cst_12 : f32 to vector<16x32xf32>
    %cst_13 = arith.constant 0.000000e+00 : f32
    %17 = vector.broadcast %cst_13 : f32 to vector<16x32xf32>
    %18 = vector.extract_strided_slice %11 {offsets = [0, 0], sizes = [16, 128], strides = [1, 1]} : vector<128x128xf32> to vector<16x128xf32>
    %19 = arith.truncf %16 : vector<16x32xf32> to vector<16x32xbf16>
    %cst_14 = arith.constant dense<0.000000e+00> : vector<16x128xf32>
    %20 = tpu.matmul %19, %2, %cst_14 {dimension_numbers = #tpu.dot_dimension_numbers<[1], [0], [0], [1], [0, 0, 1, 1], [], []>} : vector<16x32xbf16>, vector<32x128xbf16>, vector<16x128xf32> -> vector<16x128xf32>
    %21 = arith.addf %18, %20 : vector<16x128xf32>
    %22 = vector.extract_strided_slice %21 {offsets = [0, 0], sizes = [16, 96], strides = [1, 1]} : vector<16x128xf32> to vector<16x96xf32>
    %23 = arith.negf %22 : vector<16x96xf32>
    %24 = math.exp %23 : vector<16x96xf32>
    %cst_15 = arith.constant 1.000000e+00 : f32
    %25 = vector.broadcast %cst_15 : f32 to vector<16x96xf32>
    %26 = arith.addf %25, %24 : vector<16x96xf32>
    %27 = arith.divf %25, %26 : vector<16x96xf32>
    %28 = vector.extract_strided_slice %21 {offsets = [0, 96], sizes = [16, 32], strides = [1, 1]} : vector<16x128xf32> to vector<16x32xf32>
    %29 = math.tanh %28 : vector<16x32xf32>
    %30 = vector.extract_strided_slice %27 {offsets = [0, 0], sizes = [16, 32], strides = [1, 1]} : vector<16x96xf32> to vector<16x32xf32>
    %31 = vector.extract_strided_slice %27 {offsets = [0, 32], sizes = [16, 32], strides = [1, 1]} : vector<16x96xf32> to vector<16x32xf32>
    %32 = vector.extract_strided_slice %27 {offsets = [0, 64], sizes = [16, 32], strides = [1, 1]} : vector<16x96xf32> to vector<16x32xf32>
    %33 = arith.mulf %31, %17 : vector<16x32xf32>
    %34 = arith.mulf %30, %29 : vector<16x32xf32>
    %35 = arith.addf %33, %34 : vector<16x32xf32>
    %36 = math.tanh %35 : vector<16x32xf32>
    %37 = arith.mulf %32, %36 : vector<16x32xf32>
    %38 = vector.extract_strided_slice %11 {offsets = [16, 0], sizes = [16, 128], strides = [1, 1]} : vector<128x128xf32> to vector<16x128xf32>
    %39 = arith.truncf %37 : vector<16x32xf32> to vector<16x32xbf16>
    %cst_16 = arith.constant dense<0.000000e+00> : vector<16x128xf32>
    %40 = tpu.matmul %39, %2, %cst_16 {dimension_numbers = #tpu.dot_dimension_numbers<[1], [0], [0], [1], [0, 0, 1, 1], [], []>} : vector<16x32xbf16>, vector<32x128xbf16>, vector<16x128xf32> -> vector<16x128xf32>
    %41 = arith.addf %38, %40 : vector<16x128xf32>
    %42 = vector.extract_strided_slice %41 {offsets = [0, 0], sizes = [16, 96], strides = [1, 1]} : vector<16x128xf32> to vector<16x96xf32>
    %43 = arith.negf %42 : vector<16x96xf32>
    %44 = math.exp %43 : vector<16x96xf32>
    %cst_17 = arith.constant 1.000000e+00 : f32
    %45 = vector.broadcast %cst_17 : f32 to vector<16x96xf32>
    %46 = arith.addf %45, %44 : vector<16x96xf32>
    %47 = arith.divf %45, %46 : vector<16x96xf32>
    %48 = vector.extract_strided_slice %41 {offsets = [0, 96], sizes = [16, 32], strides = [1, 1]} : vector<16x128xf32> to vector<16x32xf32>
    %49 = math.tanh %48 : vector<16x32xf32>
    %50 = vector.extract_strided_slice %47 {offsets = [0, 0], sizes = [16, 32], strides = [1, 1]} : vector<16x96xf32> to vector<16x32xf32>
    %51 = vector.extract_strided_slice %47 {offsets = [0, 32], sizes = [16, 32], strides = [1, 1]} : vector<16x96xf32> to vector<16x32xf32>
    %52 = vector.extract_strided_slice %47 {offsets = [0, 64], sizes = [16, 32], strides = [1, 1]} : vector<16x96xf32> to vector<16x32xf32>
    %53 = arith.mulf %51, %35 : vector<16x32xf32>
    %54 = arith.mulf %50, %49 : vector<16x32xf32>
    %55 = arith.addf %53, %54 : vector<16x32xf32>
    %56 = math.tanh %55 : vector<16x32xf32>
    %57 = arith.mulf %52, %56 : vector<16x32xf32>
    %58 = vector.extract_strided_slice %11 {offsets = [32, 0], sizes = [16, 128], strides = [1, 1]} : vector<128x128xf32> to vector<16x128xf32>
    %59 = arith.truncf %57 : vector<16x32xf32> to vector<16x32xbf16>
    %cst_18 = arith.constant dense<0.000000e+00> : vector<16x128xf32>
    %60 = tpu.matmul %59, %2, %cst_18 {dimension_numbers = #tpu.dot_dimension_numbers<[1], [0], [0], [1], [0, 0, 1, 1], [], []>} : vector<16x32xbf16>, vector<32x128xbf16>, vector<16x128xf32> -> vector<16x128xf32>
    %61 = arith.addf %58, %60 : vector<16x128xf32>
    %62 = vector.extract_strided_slice %61 {offsets = [0, 0], sizes = [16, 96], strides = [1, 1]} : vector<16x128xf32> to vector<16x96xf32>
    %63 = arith.negf %62 : vector<16x96xf32>
    %64 = math.exp %63 : vector<16x96xf32>
    %cst_19 = arith.constant 1.000000e+00 : f32
    %65 = vector.broadcast %cst_19 : f32 to vector<16x96xf32>
    %66 = arith.addf %65, %64 : vector<16x96xf32>
    %67 = arith.divf %65, %66 : vector<16x96xf32>
    %68 = vector.extract_strided_slice %61 {offsets = [0, 96], sizes = [16, 32], strides = [1, 1]} : vector<16x128xf32> to vector<16x32xf32>
    %69 = math.tanh %68 : vector<16x32xf32>
    %70 = vector.extract_strided_slice %67 {offsets = [0, 0], sizes = [16, 32], strides = [1, 1]} : vector<16x96xf32> to vector<16x32xf32>
    %71 = vector.extract_strided_slice %67 {offsets = [0, 32], sizes = [16, 32], strides = [1, 1]} : vector<16x96xf32> to vector<16x32xf32>
    %72 = vector.extract_strided_slice %67 {offsets = [0, 64], sizes = [16, 32], strides = [1, 1]} : vector<16x96xf32> to vector<16x32xf32>
    %73 = arith.mulf %71, %55 : vector<16x32xf32>
    %74 = arith.mulf %70, %69 : vector<16x32xf32>
    %75 = arith.addf %73, %74 : vector<16x32xf32>
    %76 = math.tanh %75 : vector<16x32xf32>
    %77 = arith.mulf %72, %76 : vector<16x32xf32>
    %78 = vector.extract_strided_slice %11 {offsets = [48, 0], sizes = [16, 128], strides = [1, 1]} : vector<128x128xf32> to vector<16x128xf32>
    %79 = arith.truncf %77 : vector<16x32xf32> to vector<16x32xbf16>
    %cst_20 = arith.constant dense<0.000000e+00> : vector<16x128xf32>
    %80 = tpu.matmul %79, %2, %cst_20 {dimension_numbers = #tpu.dot_dimension_numbers<[1], [0], [0], [1], [0, 0, 1, 1], [], []>} : vector<16x32xbf16>, vector<32x128xbf16>, vector<16x128xf32> -> vector<16x128xf32>
    %81 = arith.addf %78, %80 : vector<16x128xf32>
    %82 = vector.extract_strided_slice %81 {offsets = [0, 0], sizes = [16, 96], strides = [1, 1]} : vector<16x128xf32> to vector<16x96xf32>
    %83 = arith.negf %82 : vector<16x96xf32>
    %84 = math.exp %83 : vector<16x96xf32>
    %cst_21 = arith.constant 1.000000e+00 : f32
    %85 = vector.broadcast %cst_21 : f32 to vector<16x96xf32>
    %86 = arith.addf %85, %84 : vector<16x96xf32>
    %87 = arith.divf %85, %86 : vector<16x96xf32>
    %88 = vector.extract_strided_slice %81 {offsets = [0, 96], sizes = [16, 32], strides = [1, 1]} : vector<16x128xf32> to vector<16x32xf32>
    %89 = math.tanh %88 : vector<16x32xf32>
    %90 = vector.extract_strided_slice %87 {offsets = [0, 0], sizes = [16, 32], strides = [1, 1]} : vector<16x96xf32> to vector<16x32xf32>
    %91 = vector.extract_strided_slice %87 {offsets = [0, 32], sizes = [16, 32], strides = [1, 1]} : vector<16x96xf32> to vector<16x32xf32>
    %92 = vector.extract_strided_slice %87 {offsets = [0, 64], sizes = [16, 32], strides = [1, 1]} : vector<16x96xf32> to vector<16x32xf32>
    %93 = arith.mulf %91, %75 : vector<16x32xf32>
    %94 = arith.mulf %90, %89 : vector<16x32xf32>
    %95 = arith.addf %93, %94 : vector<16x32xf32>
    %96 = math.tanh %95 : vector<16x32xf32>
    %97 = arith.mulf %92, %96 : vector<16x32xf32>
    %98 = vector.extract_strided_slice %11 {offsets = [64, 0], sizes = [16, 128], strides = [1, 1]} : vector<128x128xf32> to vector<16x128xf32>
    %99 = arith.truncf %97 : vector<16x32xf32> to vector<16x32xbf16>
    %cst_22 = arith.constant dense<0.000000e+00> : vector<16x128xf32>
    %100 = tpu.matmul %99, %2, %cst_22 {dimension_numbers = #tpu.dot_dimension_numbers<[1], [0], [0], [1], [0, 0, 1, 1], [], []>} : vector<16x32xbf16>, vector<32x128xbf16>, vector<16x128xf32> -> vector<16x128xf32>
    %101 = arith.addf %98, %100 : vector<16x128xf32>
    %102 = vector.extract_strided_slice %101 {offsets = [0, 0], sizes = [16, 96], strides = [1, 1]} : vector<16x128xf32> to vector<16x96xf32>
    %103 = arith.negf %102 : vector<16x96xf32>
    %104 = math.exp %103 : vector<16x96xf32>
    %cst_23 = arith.constant 1.000000e+00 : f32
    %105 = vector.broadcast %cst_23 : f32 to vector<16x96xf32>
    %106 = arith.addf %105, %104 : vector<16x96xf32>
    %107 = arith.divf %105, %106 : vector<16x96xf32>
    %108 = vector.extract_strided_slice %101 {offsets = [0, 96], sizes = [16, 32], strides = [1, 1]} : vector<16x128xf32> to vector<16x32xf32>
    %109 = math.tanh %108 : vector<16x32xf32>
    %110 = vector.extract_strided_slice %107 {offsets = [0, 0], sizes = [16, 32], strides = [1, 1]} : vector<16x96xf32> to vector<16x32xf32>
    %111 = vector.extract_strided_slice %107 {offsets = [0, 32], sizes = [16, 32], strides = [1, 1]} : vector<16x96xf32> to vector<16x32xf32>
    %112 = vector.extract_strided_slice %107 {offsets = [0, 64], sizes = [16, 32], strides = [1, 1]} : vector<16x96xf32> to vector<16x32xf32>
    %113 = arith.mulf %111, %95 : vector<16x32xf32>
    %114 = arith.mulf %110, %109 : vector<16x32xf32>
    %115 = arith.addf %113, %114 : vector<16x32xf32>
    %116 = math.tanh %115 : vector<16x32xf32>
    %117 = arith.mulf %112, %116 : vector<16x32xf32>
    %118 = vector.extract_strided_slice %11 {offsets = [80, 0], sizes = [16, 128], strides = [1, 1]} : vector<128x128xf32> to vector<16x128xf32>
    %119 = arith.truncf %117 : vector<16x32xf32> to vector<16x32xbf16>
    %cst_24 = arith.constant dense<0.000000e+00> : vector<16x128xf32>
    %120 = tpu.matmul %119, %2, %cst_24 {dimension_numbers = #tpu.dot_dimension_numbers<[1], [0], [0], [1], [0, 0, 1, 1], [], []>} : vector<16x32xbf16>, vector<32x128xbf16>, vector<16x128xf32> -> vector<16x128xf32>
    %121 = arith.addf %118, %120 : vector<16x128xf32>
    %122 = vector.extract_strided_slice %121 {offsets = [0, 0], sizes = [16, 96], strides = [1, 1]} : vector<16x128xf32> to vector<16x96xf32>
    %123 = arith.negf %122 : vector<16x96xf32>
    %124 = math.exp %123 : vector<16x96xf32>
    %cst_25 = arith.constant 1.000000e+00 : f32
    %125 = vector.broadcast %cst_25 : f32 to vector<16x96xf32>
    %126 = arith.addf %125, %124 : vector<16x96xf32>
    %127 = arith.divf %125, %126 : vector<16x96xf32>
    %128 = vector.extract_strided_slice %121 {offsets = [0, 96], sizes = [16, 32], strides = [1, 1]} : vector<16x128xf32> to vector<16x32xf32>
    %129 = math.tanh %128 : vector<16x32xf32>
    %130 = vector.extract_strided_slice %127 {offsets = [0, 0], sizes = [16, 32], strides = [1, 1]} : vector<16x96xf32> to vector<16x32xf32>
    %131 = vector.extract_strided_slice %127 {offsets = [0, 32], sizes = [16, 32], strides = [1, 1]} : vector<16x96xf32> to vector<16x32xf32>
    %132 = vector.extract_strided_slice %127 {offsets = [0, 64], sizes = [16, 32], strides = [1, 1]} : vector<16x96xf32> to vector<16x32xf32>
    %133 = arith.mulf %131, %115 : vector<16x32xf32>
    %134 = arith.mulf %130, %129 : vector<16x32xf32>
    %135 = arith.addf %133, %134 : vector<16x32xf32>
    %136 = math.tanh %135 : vector<16x32xf32>
    %137 = arith.mulf %132, %136 : vector<16x32xf32>
    %138 = vector.extract_strided_slice %11 {offsets = [96, 0], sizes = [16, 128], strides = [1, 1]} : vector<128x128xf32> to vector<16x128xf32>
    %139 = arith.truncf %137 : vector<16x32xf32> to vector<16x32xbf16>
    %cst_26 = arith.constant dense<0.000000e+00> : vector<16x128xf32>
    %140 = tpu.matmul %139, %2, %cst_26 {dimension_numbers = #tpu.dot_dimension_numbers<[1], [0], [0], [1], [0, 0, 1, 1], [], []>} : vector<16x32xbf16>, vector<32x128xbf16>, vector<16x128xf32> -> vector<16x128xf32>
    %141 = arith.addf %138, %140 : vector<16x128xf32>
    %142 = vector.extract_strided_slice %141 {offsets = [0, 0], sizes = [16, 96], strides = [1, 1]} : vector<16x128xf32> to vector<16x96xf32>
    %143 = arith.negf %142 : vector<16x96xf32>
    %144 = math.exp %143 : vector<16x96xf32>
    %cst_27 = arith.constant 1.000000e+00 : f32
    %145 = vector.broadcast %cst_27 : f32 to vector<16x96xf32>
    %146 = arith.addf %145, %144 : vector<16x96xf32>
    %147 = arith.divf %145, %146 : vector<16x96xf32>
    %148 = vector.extract_strided_slice %141 {offsets = [0, 96], sizes = [16, 32], strides = [1, 1]} : vector<16x128xf32> to vector<16x32xf32>
    %149 = math.tanh %148 : vector<16x32xf32>
    %150 = vector.extract_strided_slice %147 {offsets = [0, 0], sizes = [16, 32], strides = [1, 1]} : vector<16x96xf32> to vector<16x32xf32>
    %151 = vector.extract_strided_slice %147 {offsets = [0, 32], sizes = [16, 32], strides = [1, 1]} : vector<16x96xf32> to vector<16x32xf32>
    %152 = vector.extract_strided_slice %147 {offsets = [0, 64], sizes = [16, 32], strides = [1, 1]} : vector<16x96xf32> to vector<16x32xf32>
    %153 = arith.mulf %151, %135 : vector<16x32xf32>
    %154 = arith.mulf %150, %149 : vector<16x32xf32>
    %155 = arith.addf %153, %154 : vector<16x32xf32>
    %156 = math.tanh %155 : vector<16x32xf32>
    %157 = arith.mulf %152, %156 : vector<16x32xf32>
    %158 = vector.extract_strided_slice %11 {offsets = [112, 0], sizes = [16, 128], strides = [1, 1]} : vector<128x128xf32> to vector<16x128xf32>
    %159 = arith.truncf %157 : vector<16x32xf32> to vector<16x32xbf16>
    %cst_28 = arith.constant dense<0.000000e+00> : vector<16x128xf32>
    %160 = tpu.matmul %159, %2, %cst_28 {dimension_numbers = #tpu.dot_dimension_numbers<[1], [0], [0], [1], [0, 0, 1, 1], [], []>} : vector<16x32xbf16>, vector<32x128xbf16>, vector<16x128xf32> -> vector<16x128xf32>
    %161 = arith.addf %158, %160 : vector<16x128xf32>
    %162 = vector.extract_strided_slice %161 {offsets = [0, 0], sizes = [16, 96], strides = [1, 1]} : vector<16x128xf32> to vector<16x96xf32>
    %163 = arith.negf %162 : vector<16x96xf32>
    %164 = math.exp %163 : vector<16x96xf32>
    %cst_29 = arith.constant 1.000000e+00 : f32
    %165 = vector.broadcast %cst_29 : f32 to vector<16x96xf32>
    %166 = arith.addf %165, %164 : vector<16x96xf32>
    %167 = arith.divf %165, %166 : vector<16x96xf32>
    %168 = vector.extract_strided_slice %161 {offsets = [0, 96], sizes = [16, 32], strides = [1, 1]} : vector<16x128xf32> to vector<16x32xf32>
    %169 = math.tanh %168 : vector<16x32xf32>
    %170 = vector.extract_strided_slice %167 {offsets = [0, 0], sizes = [16, 32], strides = [1, 1]} : vector<16x96xf32> to vector<16x32xf32>
    %171 = vector.extract_strided_slice %167 {offsets = [0, 32], sizes = [16, 32], strides = [1, 1]} : vector<16x96xf32> to vector<16x32xf32>
    %172 = vector.extract_strided_slice %167 {offsets = [0, 64], sizes = [16, 32], strides = [1, 1]} : vector<16x96xf32> to vector<16x32xf32>
    %173 = arith.mulf %171, %155 : vector<16x32xf32>
    %174 = arith.mulf %170, %169 : vector<16x32xf32>
    %175 = arith.addf %173, %174 : vector<16x32xf32>
    %176 = math.tanh %175 : vector<16x32xf32>
    %177 = arith.mulf %172, %176 : vector<16x32xf32>
    %cst_30 = arith.constant 0.000000e+00 : f32
    %178 = vector.broadcast %cst_30 : f32 to vector<16x32xf32>
    %179 = vector.extract_strided_slice %15 {offsets = [0, 0], sizes = [16, 96], strides = [1, 1]} : vector<16x128xf32> to vector<16x96xf32>
    %180 = arith.negf %179 : vector<16x96xf32>
    %181 = math.exp %180 : vector<16x96xf32>
    %cst_31 = arith.constant 1.000000e+00 : f32
    %182 = vector.broadcast %cst_31 : f32 to vector<16x96xf32>
    %183 = arith.addf %182, %181 : vector<16x96xf32>
    %184 = arith.divf %182, %183 : vector<16x96xf32>
    %185 = vector.extract_strided_slice %15 {offsets = [0, 96], sizes = [16, 32], strides = [1, 1]} : vector<16x128xf32> to vector<16x32xf32>
    %186 = math.tanh %185 : vector<16x32xf32>
    %187 = vector.extract_strided_slice %184 {offsets = [0, 0], sizes = [16, 32], strides = [1, 1]} : vector<16x96xf32> to vector<16x32xf32>
    %188 = vector.extract_strided_slice %184 {offsets = [0, 32], sizes = [16, 32], strides = [1, 1]} : vector<16x96xf32> to vector<16x32xf32>
    %189 = vector.extract_strided_slice %184 {offsets = [0, 64], sizes = [16, 32], strides = [1, 1]} : vector<16x96xf32> to vector<16x32xf32>
    %190 = arith.mulf %188, %178 : vector<16x32xf32>
    %191 = arith.mulf %187, %186 : vector<16x32xf32>
    %192 = arith.addf %190, %191 : vector<16x32xf32>
    %193 = math.tanh %192 : vector<16x32xf32>
    %194 = arith.mulf %189, %193 : vector<16x32xf32>
    %195 = arith.truncf %177 : vector<16x32xf32> to vector<16x32xbf16>
    %cst_32 = arith.constant dense<0.000000e+00> : vector<16x128xf32>
    %196 = tpu.matmul %195, %3, %cst_32 {dimension_numbers = #tpu.dot_dimension_numbers<[1], [0], [0], [1], [0, 0, 1, 1], [], []>} : vector<16x32xbf16>, vector<32x128xbf16>, vector<16x128xf32> -> vector<16x128xf32>
    %197 = arith.truncf %194 : vector<16x32xf32> to vector<16x32xbf16>
    %cst_33 = arith.constant dense<0.000000e+00> : vector<16x128xf32>
    %198 = tpu.matmul %197, %4, %cst_33 {dimension_numbers = #tpu.dot_dimension_numbers<[1], [0], [0], [1], [0, 0, 1, 1], [], []>} : vector<16x32xbf16>, vector<32x128xbf16>, vector<16x128xf32> -> vector<16x128xf32>
    %199 = arith.addf %196, %198 : vector<16x128xf32>
    %200 = vector.broadcast %7 : vector<1x128xf32> to vector<16x128xf32>
    %201 = arith.addf %199, %200 : vector<16x128xf32>
    %c0_34 = arith.constant 0 : index
    %c0_35 = arith.constant 0 : index
    %202 = vector.load %arg3[%c0_34, %c0_35] : memref<16x128xf32, #tpu.memory_space<vmem>>, vector<16x128xf32>
    tpu.vector_store %arg3[%c0_34, %c0_35], %201 {strides = array<i32>} : memref<16x128xf32, #tpu.memory_space<vmem>>, vector<16x128xf32>,
    return
  }
}

</mosaic_0001>

<llo_original>
// kernel: tpu_custom_call.1
$region0: #{tpu_custom_call.1}
  #allocation0 [shape = 'u32[]', space=smem, size = 0x4, offset = 0x4, fixed_abs, tag = 'smem constant byte address 0x4 - core index']
  #allocation1 [shape = 'u32[144,128]{1,0:T(1,128)}', space=vmem, size = 0x12000, scoped, tag = 'internal scratch']
  %s0 = inlined_call_operand.vmem [shape: bf16[128,24], index: 0, kind: input, shape index: {}]
  %s1 = inlined_call_operand.vmem [shape: bf16[144,128], index: 1, kind: input, shape index: {}]
  %s2 = inlined_call_operand.vmem [shape: f32[3,128], index: 2, kind: input, shape index: {}]
  %s3 = inlined_call_operand.hbm [shape: f32[16,128], index: 3, kind: output, shape index: {}]
  %s4 = sld [smem:[#allocation0]]
  $region22: #{tpu_custom_call.1} parent=0
    _
  %s6 = ssub.s32 1, %s4
  %s7 = scalar_select 0, %s6, %s4
  $region1: #{tpu_custom_call.1} parent=0
    #allocation2 [shape = 'u8[8192]{0}', space=vmem, size = 0x2000, scoped, tag = 'output window, operand 0, single buffered']
    #allocation3 [shape = 's32[1]{0}', space=sflag, size = 0x4, scoped, tag = 'scoped memory for tpu_custom_call.1']
    %8 = vsyncpa [#allocation3], 0
    // Predicated region
    $region2: #{tpu_custom_call.1} parent=1 // pred_check
      _
    $region3: #{tpu_custom_call.1} parent=1 // pred_check_branch
      %10 = sbr.rel (0) target = $region5
    $region4: #{tpu_custom_call.1} parent=1 // pred_region
      _
    $region5: #{tpu_custom_call.1} parent=1 // pred_fallthru
      _
    // Predicated region
    $region6: #{tpu_custom_call.1} parent=1 // pred_check
      _
    $region7: #{tpu_custom_call.1} parent=1 // pred_check_branch
      %12 = sbr.rel (0) target = $region9
    $region8: #{tpu_custom_call.1} parent=1 // pred_region
      _
    $region9: #{tpu_custom_call.1} parent=1 // pred_fallthru
      _
    // Predicated region
    $region10: #{tpu_custom_call.1} parent=1 // pred_check
      _
    $region11: #{tpu_custom_call.1} parent=1 // pred_check_branch
      %14 = sbr.rel (0) target = $region13
    $region12: #{tpu_custom_call.1} parent=1 // pred_region
      _
    $region13: #{tpu_custom_call.1} parent=1 // pred_fallthru
      _
    %v16 = vld [vmem:[%s1] sm:$0xf]
    %v17 = vld [vmem:[%s1 + $0x4] sm:$0xf]
    %v18 = vld [vmem:[%s1 + $0x8] sm:$0xf]
    %v19 = vld [vmem:[%s1 + $0xc] sm:$0xf]
    %v20 = vld [vmem:[%s1 + $0x10] sm:$0xf]
    %v21 = vld [vmem:[%s1 + $0x14] sm:$0xf]
    %v22 = vld [vmem:[%s1 + $0x18] sm:$0xf]
    %v23 = vld [vmem:[%s1 + $0x1c] sm:$0xf]
    %v24 = vld [vmem:[%s1 + $0x20] sm:$0xf]
    %v25 = vld [vmem:[%s1 + $0x24] sm:$0xf]
    %v26 = vld [vmem:[%s1 + $0x28] sm:$0xf]
    %v27 = vld [vmem:[%s1 + $0x2c] sm:$0xf]
    %v28 = vld [vmem:[%s1 + $0x30] sm:$0xf]
    %v29 = vld [vmem:[%s1 + $0x34] sm:$0xf]
    %v30 = vld [vmem:[%s1 + $0x38] sm:$0xf]
    %v31 = vld [vmem:[%s1 + $0x3c] sm:$0xf]
    %v32 = vld [vmem:[%s1 + $0x40] sm:$0xf]
    %v33 = vld [vmem:[%s1 + $0x44] sm:$0xf]
    %v34 = vld [vmem:[%s2] sm:$0x1]
    %v35 = vld [vmem:[%s2 + $0x1] sm:$0x1]
    %v36 = vld [vmem:[%s2 + $0x2] sm:$0x1]
    %v37 = vld [vmem:[%s0] sm:$0xf]
    %v38 = vld [vmem:[%s0 + $0x4] sm:$0xf]
    %v39 = vld [vmem:[%s0 + $0x8] sm:$0xf]
    %v40 = vld [vmem:[%s0 + $0xc] sm:$0xf]
    %v41 = vld [vmem:[%s0 + $0x10] sm:$0xf]
    %v42 = vld [vmem:[%s0 + $0x14] sm:$0xf]
    %v43 = vld [vmem:[%s0 + $0x18] sm:$0xf]
    %v44 = vld [vmem:[%s0 + $0x1c] sm:$0xf]
    %v45 = vld [vmem:[%s0 + $0x20] sm:$0xf]
    %v46 = vld [vmem:[%s0 + $0x24] sm:$0xf]
    %v47 = vld [vmem:[%s0 + $0x28] sm:$0xf]
    %v48 = vld [vmem:[%s0 + $0x2c] sm:$0xf]
    %v49 = vld [vmem:[%s0 + $0x30] sm:$0xf]
    %v50 = vld [vmem:[%s0 + $0x34] sm:$0xf]
    %v51 = vld [vmem:[%s0 + $0x38] sm:$0xf]
    %v52 = vld [vmem:[%s0 + $0x3c] sm:$0xf]
    %v53 = vlaneseq
    %v54 = vshrl.u32 %v53, 7
    %v55 = vsub.s32 0, %v54
    %v56 = vrot.slane %v34, %v55
    %v73 = vunpack.c.l.b16 %v37
    %v74 = vunpack.c.l.b16 %v38
    %v75 = vunpack.c.l.b16 %v39
    %v76 = vunpack.c.l.b16 %v40
    %v77 = vunpack.c.l.b16 %v41
    %v78 = vunpack.c.l.b16 %v42
    %v79 = vunpack.c.l.b16 %v43
    %v80 = vunpack.c.l.b16 %v44
    %v81 = vunpack.c.l.b16 %v45
    %v82 = vunpack.c.l.b16 %v46
    %v83 = vunpack.c.l.b16 %v47
    %v84 = vunpack.c.l.b16 %v48
    %v85 = vunpack.c.l.b16 %v49
    %v86 = vunpack.c.l.b16 %v50
    %v87 = vunpack.c.l.b16 %v51
    %v88 = vunpack.c.l.b16 %v52
    %v89 = vpack.c.b16 %v74, %v73
    %v90 = vpack.c.b16 %v76, %v75
    %v91 = vpack.c.b16 %v78, %v77
    %v92 = vpack.c.b16 %v80, %v79
    %v93 = vpack.c.b16 %v82, %v81
    %v94 = vpack.c.b16 %v84, %v83
    %v95 = vpack.c.b16 %v86, %v85
    %v96 = vpack.c.b16 %v88, %v87
    %v100 = vunpack.c.l.b16 %v16
    %v101 = vunpack.c.l.b16 %v17
    %v102 = vunpack.c.l.b16 %v18
    %v103 = vpack.c.b16 %v101, %v100
    %v104 = vpack.c.b16 %v102, %v102
    %vm106 = vcmask 195584
    %v108 = vsel %vm106, %v89, 0
    %v111 = vsel %vm106, %v90, 0
    %v114 = vsel %vm106, %v91, 0
    %v117 = vsel %vm106, %v92, 0
    %v120 = vsel %vm106, %v93, 0
    %v123 = vsel %vm106, %v94, 0
    %v126 = vsel %vm106, %v95, 0
    %v129 = vsel %vm106, %v96, 0
    %vm131 = vcmask 1043456
    %v133 = vsel %vm131, %v104, 0
    %135 = vmatprep.subr.bf16.mxu0 0
    %136 = vmatpush1.bf16.msra.mxu0 %v103
    %137 = vmatprep.subr.bf16.mxu0 0
    %138 = vmatpush1.bf16.msra.mxu0 %v133
    %139 = vmatprep.subr.bf16.mxu0 0
    %140 = vmatpush1.bf16.msra.mxu0 0
    %141 = vmatprep.subr.bf16.mxu0 0
    %142 = vmatpush1.bf16.msra.mxu0 0
    %143 = vmatprep.subr.bf16.mxu0 0
    %144 = vmatpush1.bf16.msra.mxu0 0
    %145 = vmatprep.subr.bf16.mxu0 0
    %146 = vmatpush1.bf16.msra.mxu0 0
    %147 = vmatprep.subr.bf16.mxu0 0
    %148 = vmatpush1.bf16.msra.mxu0 0
    %149 = vmatprep.subr.bf16.mxu0 0
    %150 = vmatpush1.bf16.msra.mxu0 0
    %151 = vmatprep.subr.bf16.mxu0 0
    %152 = vmatpush1.bf16.msra.mxu0 0
    %153 = vmatprep.subr.bf16.mxu0 0
    %154 = vmatpush1.bf16.msra.mxu0 0
    %155 = vmatprep.subr.bf16.mxu0 0
    %156 = vmatpush1.bf16.msra.mxu0 0
    %157 = vmatprep.subr.bf16.mxu0 0
    %158 = vmatpush1.bf16.msra.mxu0 0
    %159 = vmatprep.subr.bf16.mxu0 0
    %160 = vmatpush1.bf16.msra.mxu0 0
    %161 = vmatprep.subr.bf16.mxu0 0
    %162 = vmatpush1.bf16.msra.mxu0 0
    %163 = vmatprep.subr.bf16.mxu0 0
    %164 = vmatpush1.bf16.msra.mxu0 0
    %165 = vmatprep.subr.bf16.mxu0 0
    %166 = vmatpush1.bf16.msra.mxu0 0
    %167 = vmatprep.mubr.bf16.mxu0 0
    %168 = vmatmul.mubr.bf16.gmra.mrb[0].mxu0 %v108
    %v169 = vpop.f32.mrb[0].mxu0
    %v170 = vadd.f32 %v56, %v169
    %v171 = vpop.f32.mrb[0].mxu0
    %v172 = vpop.f32.mrb[0].mxu0
    %v173 = vadd.f32 %v56, %v172
    %v174 = vpop.f32.mrb[0].mxu0
    %175 = vmatprep.mubr.bf16.mxu0 0
    %176 = vmatmul.mubr.bf16.gmra.mrb[0].mxu0 %v111
    %v177 = vpop.f32.mrb[0].mxu0
    %v178 = vadd.f32 %v56, %v177
    %v179 = vpop.f32.mrb[0].mxu0
    %v180 = vpop.f32.mrb[0].mxu0
    %v181 = vadd.f32 %v56, %v180
    %v182 = vpop.f32.mrb[0].mxu0
    %183 = vmatprep.mubr.bf16.mxu0 0
    %184 = vmatmul.mubr.bf16.gmra.mrb[0].mxu0 %v114
    %v185 = vpop.f32.mrb[0].mxu0
    %v186 = vadd.f32 %v56, %v185
    %v187 = vpop.f32.mrb[0].mxu0
    %v188 = vpop.f32.mrb[0].mxu0
    %v189 = vadd.f32 %v56, %v188
    %v190 = vpop.f32.mrb[0].mxu0
    %191 = vmatprep.mubr.bf16.mxu0 0
    %192 = vmatmul.mubr.bf16.gmra.mrb[0].mxu0 %v117
    %v193 = vpop.f32.mrb[0].mxu0
    %v194 = vadd.f32 %v56, %v193
    %v195 = vpop.f32.mrb[0].mxu0
    %v196 = vpop.f32.mrb[0].mxu0
    %v197 = vadd.f32 %v56, %v196
    %v198 = vpop.f32.mrb[0].mxu0
    %199 = vmatprep.mubr.bf16.mxu0 0
    %200 = vmatmul.mubr.bf16.gmra.mrb[0].mxu0 %v120
    %v201 = vpop.f32.mrb[0].mxu0
    %v202 = vadd.f32 %v56, %v201
    %v203 = vpop.f32.mrb[0].mxu0
    %v204 = vpop.f32.mrb[0].mxu0
    %v205 = vadd.f32 %v56, %v204
    %v206 = vpop.f32.mrb[0].mxu0
    %207 = vmatprep.mubr.bf16.mxu0 0
    %208 = vmatmul.mubr.bf16.gmra.mrb[0].mxu0 %v123
    %v209 = vpop.f32.mrb[0].mxu0
    %v210 = vadd.f32 %v56, %v209
    %v211 = vpop.f32.mrb[0].mxu0
    %v212 = vpop.f32.mrb[0].mxu0
    %v213 = vadd.f32 %v56, %v212
    %v214 = vpop.f32.mrb[0].mxu0
    %215 = vmatprep.mubr.bf16.mxu0 0
    %216 = vmatmul.mubr.bf16.gmra.mrb[0].mxu0 %v126
    %v217 = vpop.f32.mrb[0].mxu0
    %v218 = vadd.f32 %v56, %v217
    %v219 = vpop.f32.mrb[0].mxu0
    %v220 = vpop.f32.mrb[0].mxu0
    %v221 = vadd.f32 %v56, %v220
    %v222 = vpop.f32.mrb[0].mxu0
    %223 = vmatprep.mubr.bf16.mxu0 0
    %224 = vmatmul.mubr.bf16.gmra.mrb[0].mxu0 %v129
    %v225 = vpop.f32.mrb[0].mxu0
    %v226 = vadd.f32 %v56, %v225
    %v227 = vpop.f32.mrb[0].mxu0
    %v228 = vpop.f32.mrb[0].mxu0
    %v229 = vadd.f32 %v56, %v228
    %v230 = vpop.f32.mrb[0].mxu0
    %231 = vdwg.mxu0
    %v232 = vlaneseq
    %v233 = vshrl.u32 %v232, 7
    %v234 = vsub.s32 0, %v233
    %v235 = vrot.slane %v35, %v234
    %v239 = vunpack.c.l.b16 %v19
    %v240 = vunpack.c.l.b16 %v20
    %v241 = vunpack.c.l.b16 %v21
    %v242 = vpack.c.b16 %v240, %v239
    %v243 = vpack.c.b16 %v241, %v241
    %v246 = vsel %vm131, %v243, 0
    %248 = vmatprep.subr.bf16.mxu0 0
    %249 = vmatpush1.bf16.msra.mxu0 %v242
    %250 = vmatprep.subr.bf16.mxu0 0
    %251 = vmatpush1.bf16.msra.mxu0 %v246
    %252 = vmatprep.subr.bf16.mxu0 0
    %253 = vmatpush1.bf16.msra.mxu0 0
    %254 = vmatprep.subr.bf16.mxu0 0
    %255 = vmatpush1.bf16.msra.mxu0 0
    %256 = vmatprep.subr.bf16.mxu0 0
    %257 = vmatpush1.bf16.msra.mxu0 0
    %258 = vmatprep.subr.bf16.mxu0 0
    %259 = vmatpush1.bf16.msra.mxu0 0
    %260 = vmatprep.subr.bf16.mxu0 0
    %261 = vmatpush1.bf16.msra.mxu0 0
    %262 = vmatprep.subr.bf16.mxu0 0
    %263 = vmatpush1.bf16.msra.mxu0 0
    %264 = vmatprep.subr.bf16.mxu0 0
    %265 = vmatpush1.bf16.msra.mxu0 0
    %266 = vmatprep.subr.bf16.mxu0 0
    %267 = vmatpush1.bf16.msra.mxu0 0
    %268 = vmatprep.subr.bf16.mxu0 0
    %269 = vmatpush1.bf16.msra.mxu0 0
    %270 = vmatprep.subr.bf16.mxu0 0
    %271 = vmatpush1.bf16.msra.mxu0 0
    %272 = vmatprep.subr.bf16.mxu0 0
    %273 = vmatpush1.bf16.msra.mxu0 0
    %274 = vmatprep.subr.bf16.mxu0 0
    %275 = vmatpush1.bf16.msra.mxu0 0
    %276 = vmatprep.subr.bf16.mxu0 0
    %277 = vmatpush1.bf16.msra.mxu0 0
    %278 = vmatprep.subr.bf16.mxu0 0
    %279 = vmatpush1.bf16.msra.mxu0 0
    %280 = vmatprep.mubr.bf16.mxu0 0
    %281 = vmatmul.mubr.bf16.gmra.mrb[0].mxu0 %v129
    %v282 = vpop.f32.mrb[0].mxu0
    %v283 = vadd.f32 %v235, %v282
    %v284 = vpop.f32.mrb[0].mxu0
    %v285 = vpop.f32.mrb[0].mxu0
    %v286 = vadd.f32 %v235, %v285
    %v287 = vpop.f32.mrb[0].mxu0
    %288 = vdwg.mxu0
    %v293 = vunpack.c.l.b16 %v22
    %v294 = vunpack.c.l.b16 %v23
    %v295 = vunpack.c.l.b16 %v24
    %v296 = vunpack.c.l.b16 %v25
    %v297 = vpack.c.b16 %v294, %v293
    %v298 = vpack.c.b16 %v296, %v295
    %vm301 = vcmask 261120
    %v303 = vsel %vm301, 0, 0
    %305 = vmatprep.subr.bf16.mxu0 0
    %306 = vmatpush1.bf16.msra.mxu0 %v297
    %307 = vmatprep.subr.bf16.mxu0 0
    %308 = vmatpush1.bf16.msra.mxu0 %v298
    %309 = vmatprep.subr.bf16.mxu0 0
    %310 = vmatpush1.bf16.msra.mxu0 0
    %311 = vmatprep.subr.bf16.mxu0 0
    %312 = vmatpush1.bf16.msra.mxu0 0
    %313 = vmatprep.subr.bf16.mxu0 0
    %314 = vmatpush1.bf16.msra.mxu0 0
    %315 = vmatprep.subr.bf16.mxu0 0
    %316 = vmatpush1.bf16.msra.mxu0 0
    %317 = vmatprep.subr.bf16.mxu0 0
    %318 = vmatpush1.bf16.msra.mxu0 0
    %319 = vmatprep.subr.bf16.mxu0 0
    %320 = vmatpush1.bf16.msra.mxu0 0
    %321 = vmatprep.subr.bf16.mxu0 0
    %322 = vmatpush1.bf16.msra.mxu0 0
    %323 = vmatprep.subr.bf16.mxu0 0
    %324 = vmatpush1.bf16.msra.mxu0 0
    %325 = vmatprep.subr.bf16.mxu0 0
    %326 = vmatpush1.bf16.msra.mxu0 0
    %327 = vmatprep.subr.bf16.mxu0 0
    %328 = vmatpush1.bf16.msra.mxu0 0
    %329 = vmatprep.subr.bf16.mxu0 0
    %330 = vmatpush1.bf16.msra.mxu0 0
    %331 = vmatprep.subr.bf16.mxu0 0
    %332 = vmatpush1.bf16.msra.mxu0 0
    %333 = vmatprep.subr.bf16.mxu0 0
    %334 = vmatpush1.bf16.msra.mxu0 0
    %335 = vmatprep.subr.bf16.mxu0 0
    %336 = vmatpush1.bf16.msra.mxu0 0
    %337 = vmatprep.mubr.bf16.mxu0 0
    %338 = vmatmul.mubr.bf16.gmra.mrb[0].mxu0 %v303
    %v339 = vpop.f32.mrb[0].mxu0
    %v340 = vadd.f32 0.0, %v339
    %v341 = vpop.f32.mrb[0].mxu0
    %v342 = vpop.f32.mrb[0].mxu0
    %v343 = vadd.f32 0.0, %v342
    %v344 = vpop.f32.mrb[0].mxu0
    %345 = vdwg.mxu0
    %v346 = vadd.f32 %v170, %v340
    %v347 = vadd.f32 %v173, %v343
    %v348 = vxor.u32 %v346, 2147483648
    %v349 = vxor.u32 %v347, 2147483648
    %v350 = vmul.f32 %v348, 1.442695
    %v351 = vpow.pop %v350
    %v352 = vmul.f32 %v349, 1.442695
    %v353 = vpow.pop %v352
    %v354 = vadd.f32 %v351, 1.0
    %v355 = vadd.f32 %v353, 1.0
    %v356 = vrcp.pop %v354
    %v357 = vmul.f32 1.0, %v356
    %v358 = vrcp.pop %v355
    %v359 = vmul.f32 1.0, %v358
    %v360 = vtanh.pop %v346
    %v361 = vtanh.pop %v347
    %v362 = vmul.f32 %v357, 0.0
    %v363 = vmul.f32 %v359, 0.0
    %366 = vrot.lane.b32.xlu0 %v360, 32
    %v367 = vpop.permute.xlu0 %366
    %368 = vrot.lane.b32.xlu0 %v361, 32
    %v369 = vpop.permute.xlu0 %368
    %v372 = vmul.f32 %v357, %v367
    %v373 = vmul.f32 %v359, %v369
    %376 = vrot.lane.b32.xlu0 %v372, 32
    %v377 = vpop.permute.xlu0 %376
    %378 = vrot.lane.b32.xlu0 %v373, 32
    %v379 = vpop.permute.xlu0 %378
    %v382 = vadd.f32 %v362, %v377
    %v383 = vadd.f32 %v363, %v379
    %v384 = vtanh.pop %v382
    %v385 = vtanh.pop %v383
    %388 = vrot.lane.b32.xlu0 %v384, 32
    %v389 = vpop.permute.xlu0 %388
    %390 = vrot.lane.b32.xlu0 %v385, 32
    %v391 = vpop.permute.xlu0 %390
    %v394 = vmul.f32 %v357, %v389
    %v395 = vmul.f32 %v359, %v391
    %v396 = vpack.c.bf16 %v395, %v394
    %398 = vrot.lane.b32.xlu0 %v396, 64
    %v399 = vpop.permute.xlu0 %398
    %v401 = vsel %vm301, %v399, 0
    %403 = vmatprep.subr.bf16.mxu0 0
    %404 = vmatpush1.bf16.msra.mxu0 %v297
    %405 = vmatprep.subr.bf16.mxu0 0
    %406 = vmatpush1.bf16.msra.mxu0 %v298
    %407 = vmatprep.subr.bf16.mxu0 0
    %408 = vmatpush1.bf16.msra.mxu0 0
    %409 = vmatprep.subr.bf16.mxu0 0
    %410 = vmatpush1.bf16.msra.mxu0 0
    %411 = vmatprep.subr.bf16.mxu0 0
    %412 = vmatpush1.bf16.msra.mxu0 0
    %413 = vmatprep.subr.bf16.mxu0 0
    %414 = vmatpush1.bf16.msra.mxu0 0
    %415 = vmatprep.subr.bf16.mxu0 0
    %416 = vmatpush1.bf16.msra.mxu0 0
    %417 = vmatprep.subr.bf16.mxu0 0
    %418 = vmatpush1.bf16.msra.mxu0 0
    %419 = vmatprep.subr.bf16.mxu0 0
    %420 = vmatpush1.bf16.msra.mxu0 0
    %421 = vmatprep.subr.bf16.mxu0 0
    %422 = vmatpush1.bf16.msra.mxu0 0
    %423 = vmatprep.subr.bf16.mxu0 0
    %424 = vmatpush1.bf16.msra.mxu0 0
    %425 = vmatprep.subr.bf16.mxu0 0
    %426 = vmatpush1.bf16.msra.mxu0 0
    %427 = vmatprep.subr.bf16.mxu0 0
    %428 = vmatpush1.bf16.msra.mxu0 0
    %429 = vmatprep.subr.bf16.mxu0 0
    %430 = vmatpush1.bf16.msra.mxu0 0
    %431 = vmatprep.subr.bf16.mxu0 0
    %432 = vmatpush1.bf16.msra.mxu0 0
    %433 = vmatprep.subr.bf16.mxu0 0
    %434 = vmatpush1.bf16.msra.mxu0 0
    %435 = vmatprep.mubr.bf16.mxu0 0
    %436 = vmatmul.mubr.bf16.gmra.mrb[0].mxu0 %v401
    %v437 = vpop.f32.mrb[0].mxu0
    %v438 = vadd.f32 0.0, %v437
    %v439 = vpop.f32.mrb[0].mxu0
    %v440 = vpop.f32.mrb[0].mxu0
    %v441 = vadd.f32 0.0, %v440
    %v442 = vpop.f32.mrb[0].mxu0
    %443 = vdwg.mxu0
    %v444 = vadd.f32 %v178, %v438
    %v445 = vadd.f32 %v181, %v441
    %v446 = vxor.u32 %v444, 2147483648
    %v447 = vxor.u32 %v445, 2147483648
    %v448 = vmul.f32 %v446, 1.442695
    %v449 = vpow.pop %v448
    %v450 = vmul.f32 %v447, 1.442695
    %v451 = vpow.pop %v450
    %v452 = vadd.f32 %v449, 1.0
    %v453 = vadd.f32 %v451, 1.0
    %v454 = vrcp.pop %v452
    %v455 = vmul.f32 1.0, %v454
    %v456 = vrcp.pop %v453
    %v457 = vmul.f32 1.0, %v456
    %v458 = vtanh.pop %v444
    %v459 = vtanh.pop %v445
    %v460 = vmul.f32 %v455, %v382
    %v461 = vmul.f32 %v457, %v383
    %464 = vrot.lane.b32.xlu0 %v458, 32
    %v465 = vpop.permute.xlu0 %464
    %466 = vrot.lane.b32.xlu0 %v459, 32
    %v467 = vpop.permute.xlu0 %466
    %v470 = vmul.f32 %v455, %v465
    %v471 = vmul.f32 %v457, %v467
    %474 = vrot.lane.b32.xlu0 %v470, 32
    %v475 = vpop.permute.xlu0 %474
    %476 = vrot.lane.b32.xlu0 %v471, 32
    %v477 = vpop.permute.xlu0 %476
    %v480 = vadd.f32 %v460, %v475
    %v481 = vadd.f32 %v461, %v477
    %v482 = vtanh.pop %v480
    %v483 = vtanh.pop %v481
    %486 = vrot.lane.b32.xlu0 %v482, 32
    %v487 = vpop.permute.xlu0 %486
    %488 = vrot.lane.b32.xlu0 %v483, 32
    %v489 = vpop.permute.xlu0 %488
    %v492 = vmul.f32 %v455, %v487
    %v493 = vmul.f32 %v457, %v489
    %v494 = vpack.c.bf16 %v493, %v492
    %496 = vrot.lane.b32.xlu0 %v494, 64
    %v497 = vpop.permute.xlu0 %496
    %v499 = vsel %vm301, %v497, 0
    %501 = vmatprep.subr.bf16.mxu0 0
    %502 = vmatpush1.bf16.msra.mxu0 %v297
    %503 = vmatprep.subr.bf16.mxu0 0
    %504 = vmatpush1.bf16.msra.mxu0 %v298
    %505 = vmatprep.subr.bf16.mxu0 0
    %506 = vmatpush1.bf16.msra.mxu0 0
    %507 = vmatprep.subr.bf16.mxu0 0
    %508 = vmatpush1.bf16.msra.mxu0 0
    %509 = vmatprep.subr.bf16.mxu0 0
    %510 = vmatpush1.bf16.msra.mxu0 0
    %511 = vmatprep.subr.bf16.mxu0 0
    %512 = vmatpush1.bf16.msra.mxu0 0
    %513 = vmatprep.subr.bf16.mxu0 0
    %514 = vmatpush1.bf16.msra.mxu0 0
    %515 = vmatprep.subr.bf16.mxu0 0
    %516 = vmatpush1.bf16.msra.mxu0 0
    %517 = vmatprep.subr.bf16.mxu0 0
    %518 = vmatpush1.bf16.msra.mxu0 0
    %519 = vmatprep.subr.bf16.mxu0 0
    %520 = vmatpush1.bf16.msra.mxu0 0
    %521 = vmatprep.subr.bf16.mxu0 0
    %522 = vmatpush1.bf16.msra.mxu0 0
    %523 = vmatprep.subr.bf16.mxu0 0
    %524 = vmatpush1.bf16.msra.mxu0 0
    %525 = vmatprep.subr.bf16.mxu0 0
    %526 = vmatpush1.bf16.msra.mxu0 0
    %527 = vmatprep.subr.bf16.mxu0 0
    %528 = vmatpush1.bf16.msra.mxu0 0
    %529 = vmatprep.subr.bf16.mxu0 0
    %530 = vmatpush1.bf16.msra.mxu0 0
    %531 = vmatprep.subr.bf16.mxu0 0
    %532 = vmatpush1.bf16.msra.mxu0 0
    %533 = vmatprep.mubr.bf16.mxu0 0
    %534 = vmatmul.mubr.bf16.gmra.mrb[0].mxu0 %v499
    %v535 = vpop.f32.mrb[0].mxu0
    %v536 = vadd.f32 0.0, %v535
    %v537 = vpop.f32.mrb[0].mxu0
    %v538 = vpop.f32.mrb[0].mxu0
    %v539 = vadd.f32 0.0, %v538
    %v540 = vpop.f32.mrb[0].mxu0
    %541 = vdwg.mxu0
    %v542 = vadd.f32 %v186, %v536
    %v543 = vadd.f32 %v189, %v539
    %v544 = vxor.u32 %v542, 2147483648
    %v545 = vxor.u32 %v543, 2147483648
    %v546 = vmul.f32 %v544, 1.442695
    %v547 = vpow.pop %v546
    %v548 = vmul.f32 %v545, 1.442695
    %v549 = vpow.pop %v548
    %v550 = vadd.f32 %v547, 1.0
    %v551 = vadd.f32 %v549, 1.0
    %v552 = vrcp.pop %v550
    %v553 = vmul.f32 1.0, %v552
    %v554 = vrcp.pop %v551
    %v555 = vmul.f32 1.0, %v554
    %v556 = vtanh.pop %v542
    %v557 = vtanh.pop %v543
    %v558 = vmul.f32 %v553, %v480
    %v559 = vmul.f32 %v555, %v481
    %562 = vrot.lane.b32.xlu0 %v556, 32
    %v563 = vpop.permute.xlu0 %562
    %564 = vrot.lane.b32.xlu0 %v557, 32
    %v565 = vpop.permute.xlu0 %564
    %v568 = vmul.f32 %v553, %v563
    %v569 = vmul.f32 %v555, %v565
    %572 = vrot.lane.b32.xlu0 %v568, 32
    %v573 = vpop.permute.xlu0 %572
    %574 = vrot.lane.b32.xlu0 %v569, 32
    %v575 = vpop.permute.xlu0 %574
    %v578 = vadd.f32 %v558, %v573
    %v579 = vadd.f32 %v559, %v575
    %v580 = vtanh.pop %v578
    %v581 = vtanh.pop %v579
    %584 = vrot.lane.b32.xlu0 %v580, 32
    %v585 = vpop.permute.xlu0 %584
    %586 = vrot.lane.b32.xlu0 %v581, 32
    %v587 = vpop.permute.xlu0 %586
    %v590 = vmul.f32 %v553, %v585
    %v591 = vmul.f32 %v555, %v587
    %v592 = vpack.c.bf16 %v591, %v590
    %594 = vrot.lane.b32.xlu0 %v592, 64
    %v595 = vpop.permute.xlu0 %594
    %v597 = vsel %vm301, %v595, 0
    %599 = vmatprep.subr.bf16.mxu0 0
    %600 = vmatpush1.bf16.msra.mxu0 %v297
    %601 = vmatprep.subr.bf16.mxu0 0
    %602 = vmatpush1.bf16.msra.mxu0 %v298
    %603 = vmatprep.subr.bf16.mxu0 0
    %604 = vmatpush1.bf16.msra.mxu0 0
    %605 = vmatprep.subr.bf16.mxu0 0
    %606 = vmatpush1.bf16.msra.mxu0 0
    %607 = vmatprep.subr.bf16.mxu0 0
    %608 = vmatpush1.bf16.msra.mxu0 0
    %609 = vmatprep.subr.bf16.mxu0 0
    %610 = vmatpush1.bf16.msra.mxu0 0
    %611 = vmatprep.subr.bf16.mxu0 0
    %612 = vmatpush1.bf16.msra.mxu0 0
    %613 = vmatprep.subr.bf16.mxu0 0
    %614 = vmatpush1.bf16.msra.mxu0 0
    %615 = vmatprep.subr.bf16.mxu0 0
    %616 = vmatpush1.bf16.msra.mxu0 0
    %617 = vmatprep.subr.bf16.mxu0 0
    %618 = vmatpush1.bf16.msra.mxu0 0
    %619 = vmatprep.subr.bf16.mxu0 0
    %620 = vmatpush1.bf16.msra.mxu0 0
    %621 = vmatprep.subr.bf16.mxu0 0
    %622 = vmatpush1.bf16.msra.mxu0 0
    %623 = vmatprep.subr.bf16.mxu0 0
    %624 = vmatpush1.bf16.msra.mxu0 0
    %625 = vmatprep.subr.bf16.mxu0 0
    %626 = vmatpush1.bf16.msra.mxu0 0
    %627 = vmatprep.subr.bf16.mxu0 0
    %628 = vmatpush1.bf16.msra.mxu0 0
    %629 = vmatprep.subr.bf16.mxu0 0
    %630 = vmatpush1.bf16.msra.mxu0 0
    %631 = vmatprep.mubr.bf16.mxu0 0
    %632 = vmatmul.mubr.bf16.gmra.mrb[0].mxu0 %v597
    %v633 = vpop.f32.mrb[0].mxu0
    %v634 = vadd.f32 0.0, %v633
    %v635 = vpop.f32.mrb[0].mxu0
    %v636 = vpop.f32.mrb[0].mxu0
    %v637 = vadd.f32 0.0, %v636
    %v638 = vpop.f32.mrb[0].mxu0
    %639 = vdwg.mxu0
    %v640 = vadd.f32 %v194, %v634
    %v641 = vadd.f32 %v197, %v637
    %v642 = vxor.u32 %v640, 2147483648
    %v643 = vxor.u32 %v641, 2147483648
    %v644 = vmul.f32 %v642, 1.442695
    %v645 = vpow.pop %v644
    %v646 = vmul.f32 %v643, 1.442695
    %v647 = vpow.pop %v646
    %v648 = vadd.f32 %v645, 1.0
    %v649 = vadd.f32 %v647, 1.0
    %v650 = vrcp.pop %v648
    %v651 = vmul.f32 1.0, %v650
    %v652 = vrcp.pop %v649
    %v653 = vmul.f32 1.0, %v652
    %v654 = vtanh.pop %v640
    %v655 = vtanh.pop %v641
    %v656 = vmul.f32 %v651, %v578
    %v657 = vmul.f32 %v653, %v579
    %660 = vrot.lane.b32.xlu0 %v654, 32
    %v661 = vpop.permute.xlu0 %660
    %662 = vrot.lane.b32.xlu0 %v655, 32
    %v663 = vpop.permute.xlu0 %662
    %v666 = vmul.f32 %v651, %v661
    %v667 = vmul.f32 %v653, %v663
    %670 = vrot.lane.b32.xlu0 %v666, 32
    %v671 = vpop.permute.xlu0 %670
    %672 = vrot.lane.b32.xlu0 %v667, 32
    %v673 = vpop.permute.xlu0 %672
    %v676 = vadd.f32 %v656, %v671
    %v677 = vadd.f32 %v657, %v673
    %v678 = vtanh.pop %v676
    %v679 = vtanh.pop %v677
    %682 = vrot.lane.b32.xlu0 %v678, 32
    %v683 = vpop.permute.xlu0 %682
    %684 = vrot.lane.b32.xlu0 %v679, 32
    %v685 = vpop.permute.xlu0 %684
    %v688 = vmul.f32 %v651, %v683
    %v689 = vmul.f32 %v653, %v685
    %v690 = vpack.c.bf16 %v689, %v688
    %692 = vrot.lane.b32.xlu0 %v690, 64
    %v693 = vpop.permute.xlu0 %692
    %v695 = vsel %vm301, %v693, 0
    %697 = vmatprep.subr.bf16.mxu0 0
    %698 = vmatpush1.bf16.msra.mxu0 %v297
    %699 = vmatprep.subr.bf16.mxu0 0
    %700 = vmatpush1.bf16.msra.mxu0 %v298
    %701 = vmatprep.subr.bf16.mxu0 0
    %702 = vmatpush1.bf16.msra.mxu0 0
    %703 = vmatprep.subr.bf16.mxu0 0
    %704 = vmatpush1.bf16.msra.mxu0 0
    %705 = vmatprep.subr.bf16.mxu0 0
    %706 = vmatpush1.bf16.msra.mxu0 0
    %707 = vmatprep.subr.bf16.mxu0 0
    %708 = vmatpush1.bf16.msra.mxu0 0
    %709 = vmatprep.subr.bf16.mxu0 0
    %710 = vmatpush1.bf16.msra.mxu0 0
    %711 = vmatprep.subr.bf16.mxu0 0
    %712 = vmatpush1.bf16.msra.mxu0 0
    %713 = vmatprep.subr.bf16.mxu0 0
    %714 = vmatpush1.bf16.msra.mxu0 0
    %715 = vmatprep.subr.bf16.mxu0 0
    %716 = vmatpush1.bf16.msra.mxu0 0
    %717 = vmatprep.subr.bf16.mxu0 0
    %718 = vmatpush1.bf16.msra.mxu0 0
    %719 = vmatprep.subr.bf16.mxu0 0
    %720 = vmatpush1.bf16.msra.mxu0 0
    %721 = vmatprep.subr.bf16.mxu0 0
    %722 = vmatpush1.bf16.msra.mxu0 0
    %723 = vmatprep.subr.bf16.mxu0 0
    %724 = vmatpush1.bf16.msra.mxu0 0
    %725 = vmatprep.subr.bf16.mxu0 0
    %726 = vmatpush1.bf16.msra.mxu0 0
    %727 = vmatprep.subr.bf16.mxu0 0
    %728 = vmatpush1.bf16.msra.mxu0 0
    %729 = vmatprep.mubr.bf16.mxu0 0
    %730 = vmatmul.mubr.bf16.gmra.mrb[0].mxu0 %v695
    %v731 = vpop.f32.mrb[0].mxu0
    %v732 = vadd.f32 0.0, %v731
    %v733 = vpop.f32.mrb[0].mxu0
    %v734 = vpop.f32.mrb[0].mxu0
    %v735 = vadd.f32 0.0, %v734
    %v736 = vpop.f32.mrb[0].mxu0
    %737 = vdwg.mxu0
    %v738 = vadd.f32 %v202, %v732
    %v739 = vadd.f32 %v205, %v735
    %v740 = vxor.u32 %v738, 2147483648
    %v741 = vxor.u32 %v739, 2147483648
    %v742 = vmul.f32 %v740, 1.442695
    %v743 = vpow.pop %v742
    %v744 = vmul.f32 %v741, 1.442695
    %v745 = vpow.pop %v744
    %v746 = vadd.f32 %v743, 1.0
    %v747 = vadd.f32 %v745, 1.0
    %v748 = vrcp.pop %v746
    %v749 = vmul.f32 1.0, %v748
    %v750 = vrcp.pop %v747
    %v751 = vmul.f32 1.0, %v750
    %v752 = vtanh.pop %v738
    %v753 = vtanh.pop %v739
    %v754 = vmul.f32 %v749, %v676
    %v755 = vmul.f32 %v751, %v677
    %758 = vrot.lane.b32.xlu0 %v752, 32
    %v759 = vpop.permute.xlu0 %758
    %760 = vrot.lane.b32.xlu0 %v753, 32
    %v761 = vpop.permute.xlu0 %760
    %v764 = vmul.f32 %v749, %v759
    %v765 = vmul.f32 %v751, %v761
    %768 = vrot.lane.b32.xlu0 %v764, 32
    %v769 = vpop.permute.xlu0 %768
    %770 = vrot.lane.b32.xlu0 %v765, 32
    %v771 = vpop.permute.xlu0 %770
    %v774 = vadd.f32 %v754, %v769
    %v775 = vadd.f32 %v755, %v771
    %v776 = vtanh.pop %v774
    %v777 = vtanh.pop %v775
    %780 = vrot.lane.b32.xlu0 %v776, 32
    %v781 = vpop.permute.xlu0 %780
    %782 = vrot.lane.b32.xlu0 %v777, 32
    %v783 = vpop.permute.xlu0 %782
    %v786 = vmul.f32 %v749, %v781
    %v787 = vmul.f32 %v751, %v783
    %v788 = vpack.c.bf16 %v787, %v786
    %790 = vrot.lane.b32.xlu0 %v788, 64
    %v791 = vpop.permute.xlu0 %790
    %v793 = vsel %vm301, %v791, 0
    %795 = vmatprep.subr.bf16.mxu0 0
    %796 = vmatpush1.bf16.msra.mxu0 %v297
    %797 = vmatprep.subr.bf16.mxu0 0
    %798 = vmatpush1.bf16.msra.mxu0 %v298
    %799 = vmatprep.subr.bf16.mxu0 0
    %800 = vmatpush1.bf16.msra.mxu0 0
    %801 = vmatprep.subr.bf16.mxu0 0
    %802 = vmatpush1.bf16.msra.mxu0 0
    %803 = vmatprep.subr.bf16.mxu0 0
    %804 = vmatpush1.bf16.msra.mxu0 0
    %805 = vmatprep.subr.bf16.mxu0 0
    %806 = vmatpush1.bf16.msra.mxu0 0
    %807 = vmatprep.subr.bf16.mxu0 0
    %808 = vmatpush1.bf16.msra.mxu0 0
    %809 = vmatprep.subr.bf16.mxu0 0
    %810 = vmatpush1.bf16.msra.mxu0 0
    %811 = vmatprep.subr.bf16.mxu0 0
    %812 = vmatpush1.bf16.msra.mxu0 0
    %813 = vmatprep.subr.bf16.mxu0 0
    %814 = vmatpush1.bf16.msra.mxu0 0
    %815 = vmatprep.subr.bf16.mxu0 0
    %816 = vmatpush1.bf16.msra.mxu0 0
    %817 = vmatprep.subr.bf16.mxu0 0
    %818 = vmatpush1.bf16.msra.mxu0 0
    %819 = vmatprep.subr.bf16.mxu0 0
    %820 = vmatpush1.bf16.msra.mxu0 0
    %821 = vmatprep.subr.bf16.mxu0 0
    %822 = vmatpush1.bf16.msra.mxu0 0
    %823 = vmatprep.subr.bf16.mxu0 0
    %824 = vmatpush1.bf16.msra.mxu0 0
    %825 = vmatprep.subr.bf16.mxu0 0
    %826 = vmatpush1.bf16.msra.mxu0 0
    %827 = vmatprep.mubr.bf16.mxu0 0
    %828 = vmatmul.mubr.bf16.gmra.mrb[0].mxu0 %v793
    %v829 = vpop.f32.mrb[0].mxu0
    %v830 = vadd.f32 0.0, %v829
    %v831 = vpop.f32.mrb[0].mxu0
    %v832 = vpop.f32.mrb[0].mxu0
    %v833 = vadd.f32 0.0, %v832
    %v834 = vpop.f32.mrb[0].mxu0
    %835 = vdwg.mxu0
    %v836 = vadd.f32 %v210, %v830
    %v837 = vadd.f32 %v213, %v833
    %v838 = vxor.u32 %v836, 2147483648
    %v839 = vxor.u32 %v837, 2147483648
    %v840 = vmul.f32 %v838, 1.442695
    %v841 = vpow.pop %v840
    %v842 = vmul.f32 %v839, 1.442695
    %v843 = vpow.pop %v842
    %v844 = vadd.f32 %v841, 1.0
    %v845 = vadd.f32 %v843, 1.0
    %v846 = vrcp.pop %v844
    %v847 = vmul.f32 1.0, %v846
    %v848 = vrcp.pop %v845
    %v849 = vmul.f32 1.0, %v848
    %v850 = vtanh.pop %v836
    %v851 = vtanh.pop %v837
    %v852 = vmul.f32 %v847, %v774
    %v853 = vmul.f32 %v849, %v775
    %856 = vrot.lane.b32.xlu0 %v850, 32
    %v857 = vpop.permute.xlu0 %856
    %858 = vrot.lane.b32.xlu0 %v851, 32
    %v859 = vpop.permute.xlu0 %858
    %v862 = vmul.f32 %v847, %v857
    %v863 = vmul.f32 %v849, %v859
    %866 = vrot.lane.b32.xlu0 %v862, 32
    %v867 = vpop.permute.xlu0 %866
    %868 = vrot.lane.b32.xlu0 %v863, 32
    %v869 = vpop.permute.xlu0 %868
    %v872 = vadd.f32 %v852, %v867
    %v873 = vadd.f32 %v853, %v869
    %v874 = vtanh.pop %v872
    %v875 = vtanh.pop %v873
    %878 = vrot.lane.b32.xlu0 %v874, 32
    %v879 = vpop.permute.xlu0 %878
    %880 = vrot.lane.b32.xlu0 %v875, 32
    %v881 = vpop.permute.xlu0 %880
    %v884 = vmul.f32 %v847, %v879
    %v885 = vmul.f32 %v849, %v881
    %v886 = vpack.c.bf16 %v885, %v884
    %888 = vrot.lane.b32.xlu0 %v886, 64
    %v889 = vpop.permute.xlu0 %888
    %v891 = vsel %vm301, %v889, 0
    %893 = vmatprep.subr.bf16.mxu0 0
    %894 = vmatpush1.bf16.msra.mxu0 %v297
    %895 = vmatprep.subr.bf16.mxu0 0
    %896 = vmatpush1.bf16.msra.mxu0 %v298
    %897 = vmatprep.subr.bf16.mxu0 0
    %898 = vmatpush1.bf16.msra.mxu0 0
    %899 = vmatprep.subr.bf16.mxu0 0
    %900 = vmatpush1.bf16.msra.mxu0 0
    %901 = vmatprep.subr.bf16.mxu0 0
    %902 = vmatpush1.bf16.msra.mxu0 0
    %903 = vmatprep.subr.bf16.mxu0 0
    %904 = vmatpush1.bf16.msra.mxu0 0
    %905 = vmatprep.subr.bf16.mxu0 0
    %906 = vmatpush1.bf16.msra.mxu0 0
    %907 = vmatprep.subr.bf16.mxu0 0
    %908 = vmatpush1.bf16.msra.mxu0 0
    %909 = vmatprep.subr.bf16.mxu0 0
    %910 = vmatpush1.bf16.msra.mxu0 0
    %911 = vmatprep.subr.bf16.mxu0 0
    %912 = vmatpush1.bf16.msra.mxu0 0
    %913 = vmatprep.subr.bf16.mxu0 0
    %914 = vmatpush1.bf16.msra.mxu0 0
    %915 = vmatprep.subr.bf16.mxu0 0
    %916 = vmatpush1.bf16.msra.mxu0 0
    %917 = vmatprep.subr.bf16.mxu0 0
    %918 = vmatpush1.bf16.msra.mxu0 0
    %919 = vmatprep.subr.bf16.mxu0 0
    %920 = vmatpush1.bf16.msra.mxu0 0
    %921 = vmatprep.subr.bf16.mxu0 0
    %922 = vmatpush1.bf16.msra.mxu0 0
    %923 = vmatprep.subr.bf16.mxu0 0
    %924 = vmatpush1.bf16.msra.mxu0 0
    %925 = vmatprep.mubr.bf16.mxu0 0
    %926 = vmatmul.mubr.bf16.gmra.mrb[0].mxu0 %v891
    %v927 = vpop.f32.mrb[0].mxu0
    %v928 = vadd.f32 0.0, %v927
    %v929 = vpop.f32.mrb[0].mxu0
    %v930 = vpop.f32.mrb[0].mxu0
    %v931 = vadd.f32 0.0, %v930
    %v932 = vpop.f32.mrb[0].mxu0
    %933 = vdwg.mxu0
    %v934 = vadd.f32 %v218, %v928
    %v935 = vadd.f32 %v221, %v931
    %v936 = vxor.u32 %v934, 2147483648
    %v937 = vxor.u32 %v935, 2147483648
    %v938 = vmul.f32 %v936, 1.442695
    %v939 = vpow.pop %v938
    %v940 = vmul.f32 %v937, 1.442695
    %v941 = vpow.pop %v940
    %v942 = vadd.f32 %v939, 1.0
    %v943 = vadd.f32 %v941, 1.0
    %v944 = vrcp.pop %v942
    %v945 = vmul.f32 1.0, %v944
    %v946 = vrcp.pop %v943
    %v947 = vmul.f32 1.0, %v946
    %v948 = vtanh.pop %v934
    %v949 = vtanh.pop %v935
    %v950 = vmul.f32 %v945, %v872
    %v951 = vmul.f32 %v947, %v873
    %954 = vrot.lane.b32.xlu0 %v948, 32
    %v955 = vpop.permute.xlu0 %954
    %956 = vrot.lane.b32.xlu0 %v949, 32
    %v957 = vpop.permute.xlu0 %956
    %v960 = vmul.f32 %v945, %v955
    %v961 = vmul.f32 %v947, %v957
    %964 = vrot.lane.b32.xlu0 %v960, 32
    %v965 = vpop.permute.xlu0 %964
    %966 = vrot.lane.b32.xlu0 %v961, 32
    %v967 = vpop.permute.xlu0 %966
    %v970 = vadd.f32 %v950, %v965
    %v971 = vadd.f32 %v951, %v967
    %v972 = vtanh.pop %v970
    %v973 = vtanh.pop %v971
    %976 = vrot.lane.b32.xlu0 %v972, 32
    %v977 = vpop.permute.xlu0 %976
    %978 = vrot.lane.b32.xlu0 %v973, 32
    %v979 = vpop.permute.xlu0 %978
    %v982 = vmul.f32 %v945, %v977
    %v983 = vmul.f32 %v947, %v979
    %v984 = vpack.c.bf16 %v983, %v982
    %986 = vrot.lane.b32.xlu0 %v984, 64
    %v987 = vpop.permute.xlu0 %986
    %v989 = vsel %vm301, %v987, 0
    %991 = vmatprep.subr.bf16.mxu0 0
    %992 = vmatpush1.bf16.msra.mxu0 %v297
    %993 = vmatprep.subr.bf16.mxu0 0
    %994 = vmatpush1.bf16.msra.mxu0 %v298
    %995 = vmatprep.subr.bf16.mxu0 0
    %996 = vmatpush1.bf16.msra.mxu0 0
    %997 = vmatprep.subr.bf16.mxu0 0
    %998 = vmatpush1.bf16.msra.mxu0 0
    %999 = vmatprep.subr.bf16.mxu0 0
    %1000 = vmatpush1.bf16.msra.mxu0 0
    %1001 = vmatprep.subr.bf16.mxu0 0
    %1002 = vmatpush1.bf16.msra.mxu0 0
    %1003 = vmatprep.subr.bf16.mxu0 0
    %1004 = vmatpush1.bf16.msra.mxu0 0
    %1005 = vmatprep.subr.bf16.mxu0 0
    %1006 = vmatpush1.bf16.msra.mxu0 0
    %1007 = vmatprep.subr.bf16.mxu0 0
    %1008 = vmatpush1.bf16.msra.mxu0 0
    %1009 = vmatprep.subr.bf16.mxu0 0
    %1010 = vmatpush1.bf16.msra.mxu0 0
    %1011 = vmatprep.subr.bf16.mxu0 0
    %1012 = vmatpush1.bf16.msra.mxu0 0
    %1013 = vmatprep.subr.bf16.mxu0 0
    %1014 = vmatpush1.bf16.msra.mxu0 0
    %1015 = vmatprep.subr.bf16.mxu0 0
    %1016 = vmatpush1.bf16.msra.mxu0 0
    %1017 = vmatprep.subr.bf16.mxu0 0
    %1018 = vmatpush1.bf16.msra.mxu0 0
    %1019 = vmatprep.subr.bf16.mxu0 0
    %1020 = vmatpush1.bf16.msra.mxu0 0
    %1021 = vmatprep.subr.bf16.mxu0 0
    %1022 = vmatpush1.bf16.msra.mxu0 0
    %1023 = vmatprep.mubr.bf16.mxu0 0
    %1024 = vmatmul.mubr.bf16.gmra.mrb[0].mxu0 %v989
    %v1025 = vpop.f32.mrb[0].mxu0
    %v1026 = vadd.f32 0.0, %v1025
    %v1027 = vpop.f32.mrb[0].mxu0
    %v1028 = vpop.f32.mrb[0].mxu0
    %v1029 = vadd.f32 0.0, %v1028
    %v1030 = vpop.f32.mrb[0].mxu0
    %1031 = vdwg.mxu0
    %v1032 = vadd.f32 %v226, %v1026
    %v1033 = vadd.f32 %v229, %v1029
    %v1034 = vxor.u32 %v1032, 2147483648
    %v1035 = vxor.u32 %v1033, 2147483648
    %v1036 = vmul.f32 %v1034, 1.442695
    %v1037 = vpow.pop %v1036
    %v1038 = vmul.f32 %v1035, 1.442695
    %v1039 = vpow.pop %v1038
    %v1040 = vadd.f32 %v1037, 1.0
    %v1041 = vadd.f32 %v1039, 1.0
    %v1042 = vrcp.pop %v1040
    %v1043 = vmul.f32 1.0, %v1042
    %v1044 = vrcp.pop %v1041
    %v1045 = vmul.f32 1.0, %v1044
    %v1046 = vtanh.pop %v1032
    %v1047 = vtanh.pop %v1033
    %v1048 = vmul.f32 %v1043, %v970
    %v1049 = vmul.f32 %v1045, %v971
    %1052 = vrot.lane.b32.xlu0 %v1046, 32
    %v1053 = vpop.permute.xlu0 %1052
    %1054 = vrot.lane.b32.xlu0 %v1047, 32
    %v1055 = vpop.permute.xlu0 %1054
    %v1058 = vmul.f32 %v1043, %v1053
    %v1059 = vmul.f32 %v1045, %v1055
    %1062 = vrot.lane.b32.xlu0 %v1058, 32
    %v1063 = vpop.permute.xlu0 %1062
    %1064 = vrot.lane.b32.xlu0 %v1059, 32
    %v1065 = vpop.permute.xlu0 %1064
    %v1068 = vadd.f32 %v1048, %v1063
    %v1069 = vadd.f32 %v1049, %v1065
    %v1070 = vtanh.pop %v1068
    %v1071 = vtanh.pop %v1069
    %1074 = vrot.lane.b32.xlu0 %v1070, 32
    %v1075 = vpop.permute.xlu0 %1074
    %1076 = vrot.lane.b32.xlu0 %v1071, 32
    %v1077 = vpop.permute.xlu0 %1076
    %v1080 = vmul.f32 %v1043, %v1075
    %v1081 = vmul.f32 %v1045, %v1077
    %v1082 = vxor.u32 %v283, 2147483648
    %v1083 = vxor.u32 %v286, 2147483648
    %v1084 = vmul.f32 %v1082, 1.442695
    %v1085 = vpow.pop %v1084
    %v1086 = vmul.f32 %v1083, 1.442695
    %v1087 = vpow.pop %v1086
    %v1088 = vadd.f32 %v1085, 1.0
    %v1089 = vadd.f32 %v1087, 1.0
    %v1090 = vrcp.pop %v1088
    %v1091 = vmul.f32 1.0, %v1090
    %v1092 = vrcp.pop %v1089
    %v1093 = vmul.f32 1.0, %v1092
    %v1094 = vtanh.pop %v283
    %v1095 = vtanh.pop %v286
    %v1096 = vmul.f32 %v1091, 0.0
    %v1097 = vmul.f32 %v1093, 0.0
    %1100 = vrot.lane.b32.xlu0 %v1094, 32
    %v1101 = vpop.permute.xlu0 %1100
    %1102 = vrot.lane.b32.xlu0 %v1095, 32
    %v1103 = vpop.permute.xlu0 %1102
    %v1106 = vmul.f32 %v1091, %v1101
    %v1107 = vmul.f32 %v1093, %v1103
    %1110 = vrot.lane.b32.xlu0 %v1106, 32
    %v1111 = vpop.permute.xlu0 %1110
    %1112 = vrot.lane.b32.xlu0 %v1107, 32
    %v1113 = vpop.permute.xlu0 %1112
    %v1116 = vadd.f32 %v1096, %v1111
    %v1117 = vadd.f32 %v1097, %v1113
    %v1118 = vtanh.pop %v1116
    %v1119 = vtanh.pop %v1117
    %1122 = vrot.lane.b32.xlu0 %v1118, 32
    %v1123 = vpop.permute.xlu0 %1122
    %1124 = vrot.lane.b32.xlu0 %v1119, 32
    %v1125 = vpop.permute.xlu0 %1124
    %v1128 = vmul.f32 %v1091, %v1123
    %v1129 = vmul.f32 %v1093, %v1125
    %v1130 = vpack.c.bf16 %v1081, %v1080
    %v1131 = vpack.c.bf16 %v1129, %v1128
    %1133 = vrot.lane.b32.xlu0 %v1131, 64
    %v1134 = vpop.permute.xlu0 %1133
    %v1139 = vunpack.c.l.b16 %v30
    %v1140 = vunpack.c.l.b16 %v31
    %v1141 = vunpack.c.l.b16 %v32
    %v1142 = vunpack.c.l.b16 %v33
    %v1143 = vpack.c.b16 %v1140, %v1139
    %v1144 = vpack.c.b16 %v1142, %v1141
    %v1148 = vsel %vm301, %v1134, 0
    %1150 = vmatprep.subr.bf16.mxu0 0
    %1151 = vmatpush1.bf16.msra.mxu0 %v1143
    %1152 = vmatprep.subr.bf16.mxu0 0
    %1153 = vmatpush1.bf16.msra.mxu0 %v1144
    %1154 = vmatprep.subr.bf16.mxu0 0
    %1155 = vmatpush1.bf16.msra.mxu0 0
    %1156 = vmatprep.subr.bf16.mxu0 0
    %1157 = vmatpush1.bf16.msra.mxu0 0
    %1158 = vmatprep.subr.bf16.mxu0 0
    %1159 = vmatpush1.bf16.msra.mxu0 0
    %1160 = vmatprep.subr.bf16.mxu0 0
    %1161 = vmatpush1.bf16.msra.mxu0 0
    %1162 = vmatprep.subr.bf16.mxu0 0
    %1163 = vmatpush1.bf16.msra.mxu0 0
    %1164 = vmatprep.subr.bf16.mxu0 0
    %1165 = vmatpush1.bf16.msra.mxu0 0
    %1166 = vmatprep.subr.bf16.mxu0 0
    %1167 = vmatpush1.bf16.msra.mxu0 0
    %1168 = vmatprep.subr.bf16.mxu0 0
    %1169 = vmatpush1.bf16.msra.mxu0 0
    %1170 = vmatprep.subr.bf16.mxu0 0
    %1171 = vmatpush1.bf16.msra.mxu0 0
    %1172 = vmatprep.subr.bf16.mxu0 0
    %1173 = vmatpush1.bf16.msra.mxu0 0
    %1174 = vmatprep.subr.bf16.mxu0 0
    %1175 = vmatpush1.bf16.msra.mxu0 0
    %1176 = vmatprep.subr.bf16.mxu0 0
    %1177 = vmatpush1.bf16.msra.mxu0 0
    %1178 = vmatprep.subr.bf16.mxu0 0
    %1179 = vmatpush1.bf16.msra.mxu0 0
    %1180 = vmatprep.subr.bf16.mxu0 0
    %1181 = vmatpush1.bf16.msra.mxu0 0
    %1182 = vmatprep.mubr.bf16.mxu0 0
    %1183 = vmatmul.mubr.bf16.gmra.mrb[0].mxu0 %v1148
    %v1184 = vpop.f32.mrb[0].mxu0
    %v1185 = vadd.f32 0.0, %v1184
    %v1186 = vpop.f32.mrb[0].mxu0
    %v1187 = vpop.f32.mrb[0].mxu0
    %v1188 = vadd.f32 0.0, %v1187
    %v1189 = vpop.f32.mrb[0].mxu0
    %1190 = vdwg.mxu0
    %1192 = vrot.lane.b32.xlu0 %v1130, 64
    %v1193 = vpop.permute.xlu0 %1192
    %v1198 = vunpack.c.l.b16 %v26
    %v1199 = vunpack.c.l.b16 %v27
    %v1200 = vunpack.c.l.b16 %v28
    %v1201 = vunpack.c.l.b16 %v29
    %v1202 = vpack.c.b16 %v1199, %v1198
    %v1203 = vpack.c.b16 %v1201, %v1200
    %v1207 = vsel %vm301, %v1193, 0
    %1209 = vmatprep.subr.bf16.mxu0 0
    %1210 = vmatpush1.bf16.msra.mxu0 %v1202
    %1211 = vmatprep.subr.bf16.mxu0 0
    %1212 = vmatpush1.bf16.msra.mxu0 %v1203
    %1213 = vmatprep.subr.bf16.mxu0 0
    %1214 = vmatpush1.bf16.msra.mxu0 0
    %1215 = vmatprep.subr.bf16.mxu0 0
    %1216 = vmatpush1.bf16.msra.mxu0 0
    %1217 = vmatprep.subr.bf16.mxu0 0
    %1218 = vmatpush1.bf16.msra.mxu0 0
    %1219 = vmatprep.subr.bf16.mxu0 0
    %1220 = vmatpush1.bf16.msra.mxu0 0
    %1221 = vmatprep.subr.bf16.mxu0 0
    %1222 = vmatpush1.bf16.msra.mxu0 0
    %1223 = vmatprep.subr.bf16.mxu0 0
    %1224 = vmatpush1.bf16.msra.mxu0 0
    %1225 = vmatprep.subr.bf16.mxu0 0
    %1226 = vmatpush1.bf16.msra.mxu0 0
    %1227 = vmatprep.subr.bf16.mxu0 0
    %1228 = vmatpush1.bf16.msra.mxu0 0
    %1229 = vmatprep.subr.bf16.mxu0 0
    %1230 = vmatpush1.bf16.msra.mxu0 0
    %1231 = vmatprep.subr.bf16.mxu0 0
    %1232 = vmatpush1.bf16.msra.mxu0 0
    %1233 = vmatprep.subr.bf16.mxu0 0
    %1234 = vmatpush1.bf16.msra.mxu0 0
    %1235 = vmatprep.subr.bf16.mxu0 0
    %1236 = vmatpush1.bf16.msra.mxu0 0
    %1237 = vmatprep.subr.bf16.mxu0 0
    %1238 = vmatpush1.bf16.msra.mxu0 0
    %1239 = vmatprep.subr.bf16.mxu0 0
    %1240 = vmatpush1.bf16.msra.mxu0 0
    %1241 = vmatprep.mubr.bf16.mxu0 0
    %1242 = vmatmul.mubr.bf16.gmra.mrb[0].mxu0 %v1207
    %v1243 = vpop.f32.mrb[0].mxu0
    %v1244 = vadd.f32 %v1185, %v1243
    %v1245 = vpop.f32.mrb[0].mxu0
    %v1246 = vpop.f32.mrb[0].mxu0
    %v1247 = vadd.f32 %v1188, %v1246
    %v1248 = vpop.f32.mrb[0].mxu0
    %1249 = vdwg.mxu0
    %v1250 = vlaneseq
    %v1251 = vshrl.u32 %v1250, 7
    %v1252 = vsub.s32 0, %v1251
    %v1253 = vrot.slane %v36, %v1252
    %v1254 = vadd.f32 %v1244, %v1253
    %v1255 = vadd.f32 %v1247, %v1253
    %1256 = vst [vmem:[#allocation2] sm:$0xff] %v1254
    %1257 = vst [vmem:[#allocation2 + $0x8] sm:$0xff] %v1255
    // Predicated region
    $region14: #{tpu_custom_call.1} parent=1 // pred_check
      _
    $region15: #{tpu_custom_call.1} parent=1 // pred_check_branch
      %1259 = sbr.rel (0) target = $region17
    $region16: #{tpu_custom_call.1} parent=1 // pred_region
      %s1261 = ssub.s32 256, 256
      %1262 = vsyncadd [#allocation3], %s1261
      %s1263 = sshll.u32 [#allocation2], 4
      %s1264 = int_to_ptr.vmem [resolvable:$true] %s1263
      %1269 = dma.vmem_to_hbm [thread:$0]  %s1264, 256, %s3, [#allocation3], 128, 128, 8
    $region17: #{tpu_custom_call.1} parent=1 // pred_fallthru
      _
    // Predicated region
    $region18: #{tpu_custom_call.1} parent=1 // pred_check
      _
    $region19: #{tpu_custom_call.1} parent=1 // pred_check_branch
      %1271 = sbr.rel (0) target = $region21
    $region20: #{tpu_custom_call.1} parent=1 // pred_region
      %1272 = dma.done [#allocation3], 256
    $region21: #{tpu_custom_call.1} parent=1 // pred_fallthru
      _
    %1273 = vsyncpa [#allocation3], 1

</llo_original>
